<compile_context>
chip_gen: v7x
topology: tpu7x:2x2x1
jax: 0.10.0
libtpu: 0.0.40
codegen_flags: <defaults>
</compile_context>

<pallas_src>
import jax
import jax.numpy as jnp
from jax.experimental import pallas as pl
from jax.experimental.pallas import tpu as pltpu

# ----------------------------- config / sizes -------------------------------
V = 128                      # synthetic vertex count (real MANO = 778)
NUM_MANO_JOINTS = 16         # MANO kinematic joints (root + 15)
NUM_REG_JOINTS = 21          # ih26m regressed joints
ROOT_JOINT_IDX = 20          # root index used in get_coord
NUM_BETAS = 10
POSE_FEAT_DIM = (NUM_MANO_JOINTS - 1) * 9          # 135
NUM_THETA = NUM_BETAS + POSE_FEAT_DIM              # 145 (fused blend K)
MANO_SIZE = 0.2              # cfg.mano_size
CROP2FULL = True             # cfg.crop2full
PARENTS = (-1, 0, 1, 2, 0, 4, 5, 0, 7, 8, 0, 10, 11, 0, 13, 14)

F32 = jnp.float32


# ============================ fused Pallas kernel ============================
# Per grid point (hand h): full batch of
#   fused shape+pose blend -> LBS skinning -> ih26m joint regression ->
#   root-centering -> camera projection (get_coord).
def _mano_kernel(bdirs_ref, vtemp_ref, theta_ref, at_ref, wT_ref, jrT_ref,
                 ct_ref, fl_ref, ish_ref,
                 mesh_ref, jpack_ref):
    B = theta_ref.shape[1]                    # static (from the block shape)

    # ---- fused shape + pose blend:  (B,145) @ (145, 3V) -> (B, 3V) lane-dense
    v_posed = vtemp_ref[0] + jnp.dot(theta_ref[0], bdirs_ref[0],
                                     preferred_element_type=F32)      # (B, 3V)
    px = v_posed[:, 0 * V:1 * V]                                      # (B, V)
    py = v_posed[:, 1 * V:2 * V]
    pz = v_posed[:, 2 * V:3 * V]

    # ---- batched LBS transforms: (16*B, 16) @ (16, V), rows are element-major
    Tt = jnp.dot(at_ref[0], wT_ref[0], preferred_element_type=F32)    # (16B, V)

    def t(e):                                                         # (B, V) slab
        return Tt[e * B:(e + 1) * B]

    vx = t(0) * px + t(1) * py + t(2) * pz + t(3)
    vy = t(4) * px + t(5) * py + t(6) * pz + t(7)
    vz = t(8) * px + t(9) * py + t(10) * pz + t(11)
    mesh = jnp.concatenate([vx, vy, vz], axis=0)                      # (3B, V)

    # ---- ih26m joint regression + root centering (get_coord) ----
    J = jnp.dot(mesh, jrT_ref[...], preferred_element_type=F32)       # (3B, 21)
    root = J[:, ROOT_JOINT_IDX:ROOT_JOINT_IDX + 1]                    # (3B, 1)
    jc = J - root                                                     # meters

    # ---- camera projection, vectorised over the batch ----
    ct = ct_ref[0]                                                    # (3B, 1)
    jm = (jc + ct) * 1000.0                                           # (3B, 21) mm
    jmx = jm[0 * B:1 * B]                                             # (B, 21)
    jmy = jm[1 * B:2 * B]
    jmz = jm[2 * B:3 * B]
    fx = fl_ref[:, 0:1]                                               # (B, 1)
    fy = fl_ref[:, 1:2]
    img_h = ish_ref[:, 0:1]
    img_w = ish_ref[:, 1:2]
    inv_z = 1.0 / (jmz + 1e-8)
    xp = jmx * inv_z * fx + img_w * 0.5                               # (B, 21)
    yp = jmy * inv_z * fy + img_h * 0.5
    # TODO(synk): cfg.crop2full == False output-heatmap rescaling branch not implemented.

    # rows 0..3B-1: joint_cam (mm), rows 3B..4B-1: x proj, rows 4B..5B-1: y proj
    jpack_ref[0] = jnp.concatenate([jc * 1000.0, xp, yp], axis=0)     # (5B, 21)

    # root-centered mesh in camera space (mm), lane-dense (V=128) store
    mesh_ref[0] = (mesh - root + ct) * 1000.0                         # (3B, V)


def mano_skin_call(kp, theta, at, ct_flat, focal_length, img_shape):
    B = theta.shape[1]
    out_shapes = (
        jax.ShapeDtypeStruct((2, 3 * B, V), F32),               # mesh_cam (mm)
        jax.ShapeDtypeStruct((2, 5 * B, NUM_REG_JOINTS), F32),  # joint_cam mm + proj
    )
    return pl.pallas_call(
        _mano_kernel,
        out_shape=out_shapes,
        grid=(2,),
        in_specs=[
            pl.BlockSpec((1, NUM_THETA, 3 * V), lambda h: (h, 0, 0)),        # blend dirs (2,145,3V)
            pl.BlockSpec((1, 1, 3 * V), lambda h: (h, 0, 0)),                # v_template (2,1,3V)
            pl.BlockSpec((1, B, NUM_THETA), lambda h: (h, 0, 0)),            # theta (2,B,145)
            pl.BlockSpec((1, 16 * B, NUM_MANO_JOINTS), lambda h: (h, 0, 0)), # A^T elem-major (2,16B,16)
            pl.BlockSpec((1, NUM_MANO_JOINTS, V), lambda h: (h, 0, 0)),      # W^T (2,16,V)
            pl.BlockSpec((V, NUM_REG_JOINTS), lambda h: (0, 0)),             # JR^T (V,21)
            pl.BlockSpec((1, 3 * B, 1), lambda h: (h, 0, 0)),                # cam_trans flat (2,3B,1)
            pl.BlockSpec((B, 2), lambda h: (0, 0)),                          # focal (B,2)
            pl.BlockSpec((B, 2), lambda h: (0, 0)),                          # img_shape (B,2)
        ],
        out_specs=[
            pl.BlockSpec((1, 3 * B, V), lambda h: (h, 0, 0)),
            pl.BlockSpec((1, 5 * B, NUM_REG_JOINTS), lambda h: (h, 0, 0)),
        ],
        compiler_params=pltpu.CompilerParams(
            dimension_semantics=("parallel",)),
    )(kp["blend_dirs"], kp["v_template_flat"], theta, at,
      kp["lbs_weights_T"], kp["joint_regressor_T"],
      ct_flat.astype(F32), focal_length.astype(F32), img_shape.astype(F32))


# ============================ plain-JAX glue =================================
def batch_rodrigues(rot_vecs):
    n = rot_vecs.shape[0]
    angle = jnp.linalg.norm(rot_vecs + 1e-8, axis=1, keepdims=True)   # (N,1)
    rot_dir = rot_vecs / angle
    cos = jnp.cos(angle)[:, None, :]
    sin = jnp.sin(angle)[:, None, :]
    rx, ry, rz = rot_dir[:, 0], rot_dir[:, 1], rot_dir[:, 2]
    zeros = jnp.zeros((n,), dtype=rot_vecs.dtype)
    K = jnp.stack([zeros, -rz, ry,
                   rz, zeros, -rx,
                   -ry, rx, zeros], axis=1).reshape(n, 3, 3)
    ident = jnp.eye(3, dtype=rot_vecs.dtype)[None]
    return ident + sin * K + (1.0 - cos) * jnp.matmul(K, K)


def batch_rigid_transform(rot_mats, joints):
    # rot_mats: (N,16,3,3), joints: (N,16,3) -> rel transforms (N,16,4,4)
    N, J = joints.shape[0], joints.shape[1]
    parent_idx = jnp.array(PARENTS[1:], dtype=jnp.int32)
    rel_joints = jnp.concatenate(
        [joints[:, :1], joints[:, 1:] - joints[:, parent_idx]], axis=1)
    top = jnp.concatenate([rot_mats, rel_joints[..., None]], axis=-1)   # (N,J,3,4)
    bottom = jnp.broadcast_to(jnp.array([0., 0., 0., 1.], F32), (N, J, 1, 4))
    transforms_mat = jnp.concatenate([top, bottom], axis=-2)            # (N,J,4,4)

    chain = [transforms_mat[:, 0]]
    for i in range(1, J):
        chain.append(jnp.matmul(chain[PARENTS[i]], transforms_mat[:, i]))
    transforms = jnp.stack(chain, axis=1)                               # (N,J,4,4)

    joints_hom = jnp.concatenate(
        [joints, jnp.zeros((N, J, 1), F32)], axis=-1)[..., None]        # (N,J,4,1)
    correction = jnp.matmul(transforms, joints_hom)                     # (N,J,4,1)
    rel_transforms = transforms - jnp.concatenate(
        [jnp.zeros((N, J, 4, 3), F32), correction], axis=-1)
    return rel_transforms


def get_camtrans(pred_cam, center, b_scale, focal_length, img_shape):
    # crop2full branch of ManoParamHead.get_camtrans
    # TODO(synk): crop2full == False branch (estimate_focal_length) not implemented.
    img_h, img_w = img_shape[:, 0], img_shape[:, 1]
    cx, cy, b = center[:, 0], center[:, 1], b_scale
    w_2, h_2 = img_w / 2.0, img_h / 2.0
    bs = b * pred_cam[:, 0] + 1e-9
    tz = MANO_SIZE * focal_length[:, 0] / bs
    tx = MANO_SIZE * (cx - w_2) / bs + pred_cam[:, 1]
    ty = MANO_SIZE * (cy - h_2) / bs + pred_cam[:, 2]
    return jnp.stack([tx, ty, tz], axis=-1)


def mano_param_head_forward(kp, poses, betas, pred_cams, center, b_scale,
                            focal_length, img_shape):
    B = poses.shape[0]
    rroot_pose = poses[:, 15 * 3:15 * 3 + 3]
    rhand_pose = poses[:, :15 * 3]
    rshape = betas[:, :10]
    lroot_pose = poses[:, 31 * 3:31 * 3 + 3]
    lhand_pose = poses[:, 15 * 3 + 3:31 * 3]
    lshape = betas[:, 10:]

    rcam_trans = get_camtrans(pred_cams[:, :3], center, b_scale,
                              focal_length, img_shape)
    lcam_trans = get_camtrans(pred_cams[:, 3:], center, b_scale,
                              focal_length, img_shape)

    # Stack both hands along a leading "hand" axis (0 = right, 1 = left).
    full_pose = jnp.stack([jnp.concatenate([rroot_pose, rhand_pose], axis=1),
                           jnp.concatenate([lroot_pose, lhand_pose], axis=1)],
                          axis=0)                                  # (2,B,48)
    shape_hb = jnp.stack([rshape, lshape], axis=0)                 # (2,B,10)
    cam_trans = jnp.stack([rcam_trans, lcam_trans], axis=0)        # (2,B,3)
    # coord-major flattened cam_trans for the kernel: row = coord*B + batch
    ct_flat = jnp.transpose(cam_trans, (0, 2, 1)).reshape(2, 3 * B, 1)

    rot_mats = batch_rodrigues(full_pose.reshape(-1, 3)).reshape(
        2, B, NUM_MANO_JOINTS, 3, 3)
    pose_feature = (rot_mats[:, :, 1:] - jnp.eye(3, dtype=F32)).reshape(
        2, B, POSE_FEAT_DIM)
    theta = jnp.concatenate([shape_hb, pose_feature], axis=-1)     # (2,B,145)

    # Rest joints depend only on betas -> regressed from precomputed small dirs
    # (no HBM round trip of v_shaped between kernels).
    J_rest = kp["j_template"][:, None] + jnp.einsum(
        "hjdk,hbk->hbjd", kp["j_shapedirs"], shape_hb)             # (2,B,16,3)

    rel = batch_rigid_transform(
        rot_mats.reshape(2 * B, NUM_MANO_JOINTS, 3, 3),
        J_rest.reshape(2 * B, NUM_MANO_JOINTS, 3))                 # (2B,16,4,4)
    # A^T grouped element-major: row = elem*B + batch, col = joint
    a_flat = rel.reshape(2, B, NUM_MANO_JOINTS, 16)                # [h,b,j,e]
    at = jnp.transpose(a_flat, (0, 3, 1, 2)).reshape(
        2, 16 * B, NUM_MANO_JOINTS)                                # (2,16B,16)

    mesh, jpack = mano_skin_call(kp, theta, at, ct_flat, focal_length, img_shape)

    mesh_hb = mesh.reshape(2, 3, B, V)                                   # (2,3,B,V)
    jc_hb = jpack[:, :3 * B, :].reshape(2, 3, B, NUM_REG_JOINTS)         # (2,3,B,21)
    jp_hb = jpack[:, 3 * B:, :].reshape(2, 2, B, NUM_REG_JOINTS)         # (2,2,B,21)

    mano_joint_cam = jnp.concatenate(
        [jnp.transpose(jc_hb[0], (1, 2, 0)),
         jnp.transpose(jc_hb[1], (1, 2, 0))], axis=1)              # (B,42,3)
    mano_joint_proj = jnp.concatenate(
        [jnp.transpose(jp_hb[0], (1, 2, 0)),
         jnp.transpose(jp_hb[1], (1, 2, 0))], axis=1)              # (B,42,2)
    mano_mesh_cam = jnp.concatenate(
        [jnp.transpose(mesh_hb[0], (1, 2, 0)),
         jnp.transpose(mesh_hb[1], (1, 2, 0))], axis=1)            # (B,2V,3)

    mano_pose = jnp.swapaxes(full_pose, 0, 1)        # (B,2,48)
    mano_shape = jnp.swapaxes(shape_hb, 0, 1)        # (B,2,10)
    cam_transl = jnp.swapaxes(cam_trans, 0, 1)       # (B,2,3)
    return (mano_pose, mano_shape, cam_transl,
            mano_joint_cam, mano_joint_proj, mano_mesh_cam)


# ============================ synthetic params ===============================
def make_params(key):
    # MANO-like raw parameter shapes (synthetic, deterministic).
    k = jax.random.split(key, 6)
    v_template = 0.1 * jax.random.normal(k[0], (V, 3), F32)
    shapedirs = 0.01 * jax.random.normal(k[1], (V, 3, NUM_BETAS), F32)
    posedirs = 0.001 * jax.random.normal(k[2], (POSE_FEAT_DIM, V * 3), F32)
    j_reg_mano = jax.nn.softmax(
        jax.random.normal(k[3], (NUM_MANO_JOINTS, V), F32), axis=1)
    lbs_weights = jax.nn.softmax(
        2.0 * jax.random.normal(k[4], (V, NUM_MANO_JOINTS), F32), axis=1)
    joint_regressor = jax.nn.softmax(
        jax.random.normal(k[5], (NUM_REG_JOINTS, V), F32), axis=1)

    right = dict(v_template=v_template, shapedirs=shapedirs, posedirs=posedirs,
                 j_regressor=j_reg_mano, lbs_weights=lbs_weights)
    # __init__ flips the x-coordinate of the left-hand shapedirs.
    # TODO(synk): real left-hand MANO also differs in v_template/posedirs/weights.
    left = dict(right, shapedirs=shapedirs.at[:, 0, :].multiply(-1.0))
    return dict(right=right, left=left, joint_regressor=joint_regressor)


def prepare_kernel_params(raw):
    """One-time re-layout of MANO params into lane-dense kernel layouts."""
    def prep_hand(hp):
        sd = hp["shapedirs"]                                           # (V,3,10)
        pd = hp["posedirs"]                                            # (135, 3V) vertex-major
        sd_t = jnp.transpose(sd, (2, 1, 0)).reshape(NUM_BETAS, 3 * V)  # coord-major
        pd_t = jnp.transpose(pd.reshape(POSE_FEAT_DIM, V, 3),
                             (0, 2, 1)).reshape(POSE_FEAT_DIM, 3 * V)
        blend_dirs = jnp.concatenate([sd_t, pd_t], axis=0)             # (145, 3V)
        vt_flat = jnp.transpose(hp["v_template"], (1, 0)).reshape(1, 3 * V)
        w_t = jnp.transpose(hp["lbs_weights"], (1, 0))                 # (16, V)
        j_template = hp["j_regressor"] @ hp["v_template"]              # (16, 3)
        j_shapedirs = jnp.einsum("jv,vdk->jdk", hp["j_regressor"], sd) # (16,3,10)
        return blend_dirs, vt_flat, w_t, j_template, j_shapedirs

    r = prep_hand(raw["right"])
    l = prep_hand(raw["left"])
    stack = lambda a, b: jnp.stack([a, b], axis=0)
    return dict(
        blend_dirs=stack(r[0], l[0]),                                  # (2,145,3V)
        v_template_flat=stack(r[1], l[1]),                             # (2,1,3V)
        lbs_weights_T=stack(r[2], l[2]),                               # (2,16,V)
        j_template=stack(r[3], l[3]),                                  # (2,16,3)
        j_shapedirs=stack(r[4], l[4]),                                 # (2,16,3,10)
        joint_regressor_T=jnp.transpose(raw["joint_regressor"], (1, 0)),  # (V,21)
    )


# ================================= main ======================================
if __name__ == "__main__":
    B = 2
    key = jax.random.PRNGKey(0)
    ks = jax.random.split(key, 8)

    poses = 0.1 * jax.random.normal(ks[0], (B, 2 * NUM_MANO_JOINTS * 3), F32)  # (B,96)
    betas = 0.5 * jax.random.normal(ks[1], (B, 2 * NUM_BETAS), F32)            # (B,20)
    pred_cams = 0.05 * jax.random.normal(ks[2], (B, 6), F32)
    pred_cams = pred_cams.at[:, 0].set(
        jax.random.uniform(ks[3], (B,), F32, 0.8, 1.2))
    pred_cams = pred_cams.at[:, 3].set(
        jax.random.uniform(ks[4], (B,), F32, 0.8, 1.2))
    center = jax.random.uniform(ks[5], (B, 2), F32, 64.0, 192.0)
    b_scale = jax.random.uniform(ks[6], (B,), F32, 80.0, 150.0)
    focal_length = jnp.full((B, 2), 1500.0, F32)
    img_shape = jnp.tile(jnp.array([[256.0, 256.0]], F32), (B, 1))   # (H, W)

    raw_params = make_params(jax.random.PRNGKey(42))
    kparams = prepare_kernel_params(raw_params)

    fwd = jax.jit(mano_param_head_forward)
    outs = fwd(kparams, poses, betas, pred_cams, center, b_scale,
               focal_length, img_shape)
    for o in jax.tree_util.tree_leaves(outs):
        jax.block_until_ready(o)

    (mano_pose, mano_shape, cam_transl,
     mano_joint_cam, mano_joint_proj, mano_mesh_cam) = outs
    assert mano_pose.shape == (B, 2, 48)
    assert mano_shape.shape == (B, 2, 10)
    assert cam_transl.shape == (B, 2, 3)
    assert mano_joint_cam.shape == (B, 2 * NUM_REG_JOINTS, 3)
    assert mano_joint_proj.shape == (B, 2 * NUM_REG_JOINTS, 2)
    assert mano_mesh_cam.shape == (B, 2 * V, 3)
    print("KERNEL_OK")
</pallas_src>

<mosaic_0001>
module attributes {stable_mosaic.version = 11 : i64} {
  func.func @_mano_kernel(%arg0: i32, %arg1: memref<1x145x384xf32, #tpu.memory_space<vmem>>, %arg2: memref<1x1x384xf32, #tpu.memory_space<vmem>>, %arg3: memref<1x2x145xf32, #tpu.memory_space<vmem>>, %arg4: memref<1x32x16xf32, #tpu.memory_space<vmem>>, %arg5: memref<1x16x128xf32, #tpu.memory_space<vmem>>, %arg6: memref<128x21xf32, #tpu.memory_space<vmem>>, %arg7: memref<1x6x1xf32, #tpu.memory_space<vmem>>, %arg8: memref<2x2xf32, #tpu.memory_space<vmem>>, %arg9: memref<2x2xf32, #tpu.memory_space<vmem>>, %arg10: memref<1x6x128xf32, #tpu.memory_space<vmem>>, %arg11: memref<1x10x21xf32, #tpu.memory_space<vmem>>) attributes {dimension_semantics = [#tpu.dimension_semantics<parallel>], iteration_bounds = array<i64: 2>, scalar_prefetch = 0 : i64, scratch_operands = 0 : i64, tpu.core_type = #tpu.core_type<tc>, window_params = [{transform_indices = @transform_0, window_bounds = array<i64: 1, 145, 384>}, {transform_indices = @transform_1, window_bounds = array<i64: 1, 1, 384>}, {transform_indices = @transform_2, window_bounds = array<i64: 1, 2, 145>}, {transform_indices = @transform_3, window_bounds = array<i64: 1, 32, 16>}, {transform_indices = @transform_4, window_bounds = array<i64: 1, 16, 128>}, {pipeline_mode = #tpu.pipeline_mode<synchronous>, transform_indices = @transform_5, window_bounds = array<i64: 128, 21>}, {transform_indices = @transform_6, window_bounds = array<i64: 1, 6, 1>}, {pipeline_mode = #tpu.pipeline_mode<synchronous>, transform_indices = @transform_7, window_bounds = array<i64: 2, 2>}, {pipeline_mode = #tpu.pipeline_mode<synchronous>, transform_indices = @transform_8, window_bounds = array<i64: 2, 2>}, {transform_indices = @transform_9, window_bounds = array<i64: 1, 6, 128>}, {transform_indices = @transform_10, window_bounds = array<i64: 1, 10, 21>}]} {
    %c0 = arith.constant 0 : index
    %c0_0 = arith.constant 0 : index
    %c0_1 = arith.constant 0 : index
    %0 = vector.load %arg2[%c0, %c0_0, %c0_1] : memref<1x1x384xf32, #tpu.memory_space<vmem>>, vector<1x1x384xf32>
    %1 = vector.shape_cast %0 : vector<1x1x384xf32> to vector<1x384xf32>
    %c0_2 = arith.constant 0 : index
    %c0_3 = arith.constant 0 : index
    %c0_4 = arith.constant 0 : index
    %2 = vector.load %arg3[%c0_2, %c0_3, %c0_4] : memref<1x2x145xf32, #tpu.memory_space<vmem>>, vector<1x2x145xf32>
    %3 = vector.shape_cast %2 : vector<1x2x145xf32> to vector<2x145xf32>
    %c0_5 = arith.constant 0 : index
    %c0_6 = arith.constant 0 : index
    %c0_7 = arith.constant 0 : index
    %4 = vector.load %arg1[%c0_5, %c0_6, %c0_7] : memref<1x145x384xf32, #tpu.memory_space<vmem>>, vector<1x145x384xf32>
    %5 = vector.shape_cast %4 : vector<1x145x384xf32> to vector<145x384xf32>
    %cst = arith.constant dense<0.000000e+00> : vector<2x384xf32>
    %6 = tpu.matmul %3, %5, %cst {dimension_numbers = #tpu.dot_dimension_numbers<[1], [0], [0], [1], [0, 0, 1, 1], [], []>} : vector<2x145xf32>, vector<145x384xf32>, vector<2x384xf32> -> vector<2x384xf32>
    %7 = vector.broadcast %1 : vector<1x384xf32> to vector<2x384xf32>
    %8 = arith.addf %7, %6 : vector<2x384xf32>
    %9 = vector.extract_strided_slice %8 {offsets = [0, 0], sizes = [2, 128], strides = [1, 1]} : vector<2x384xf32> to vector<2x128xf32>
    %10 = vector.extract_strided_slice %8 {offsets = [0, 128], sizes = [2, 128], strides = [1, 1]} : vector<2x384xf32> to vector<2x128xf32>
    %11 = vector.extract_strided_slice %8 {offsets = [0, 256], sizes = [2, 128], strides = [1, 1]} : vector<2x384xf32> to vector<2x128xf32>
    %c0_8 = arith.constant 0 : index
    %c0_9 = arith.constant 0 : index
    %c0_10 = arith.constant 0 : index
    %12 = vector.load %arg4[%c0_8, %c0_9, %c0_10] : memref<1x32x16xf32, #tpu.memory_space<vmem>>, vector<1x32x16xf32>
    %13 = vector.shape_cast %12 : vector<1x32x16xf32> to vector<32x16xf32>
    %c0_11 = arith.constant 0 : index
    %c0_12 = arith.constant 0 : index
    %c0_13 = arith.constant 0 : index
    %14 = vector.load %arg5[%c0_11, %c0_12, %c0_13] : memref<1x16x128xf32, #tpu.memory_space<vmem>>, vector<1x16x128xf32>
    %15 = vector.shape_cast %14 : vector<1x16x128xf32> to vector<16x128xf32>
    %cst_14 = arith.constant dense<0.000000e+00> : vector<32x128xf32>
    %16 = tpu.matmul %13, %15, %cst_14 {dimension_numbers = #tpu.dot_dimension_numbers<[1], [0], [0], [1], [0, 0, 1, 1], [], []>} : vector<32x16xf32>, vector<16x128xf32>, vector<32x128xf32> -> vector<32x128xf32>
    %17 = vector.extract_strided_slice %16 {offsets = [0, 0], sizes = [2, 128], strides = [1, 1]} : vector<32x128xf32> to vector<2x128xf32>
    %18 = arith.mulf %17, %9 : vector<2x128xf32>
    %19 = vector.extract_strided_slice %16 {offsets = [2, 0], sizes = [2, 128], strides = [1, 1]} : vector<32x128xf32> to vector<2x128xf32>
    %20 = arith.mulf %19, %10 : vector<2x128xf32>
    %21 = arith.addf %18, %20 : vector<2x128xf32>
    %22 = vector.extract_strided_slice %16 {offsets = [4, 0], sizes = [2, 128], strides = [1, 1]} : vector<32x128xf32> to vector<2x128xf32>
    %23 = arith.mulf %22, %11 : vector<2x128xf32>
    %24 = arith.addf %21, %23 : vector<2x128xf32>
    %25 = vector.extract_strided_slice %16 {offsets = [6, 0], sizes = [2, 128], strides = [1, 1]} : vector<32x128xf32> to vector<2x128xf32>
    %26 = arith.addf %24, %25 : vector<2x128xf32>
    %27 = vector.extract_strided_slice %16 {offsets = [8, 0], sizes = [2, 128], strides = [1, 1]} : vector<32x128xf32> to vector<2x128xf32>
    %28 = arith.mulf %27, %9 : vector<2x128xf32>
    %29 = vector.extract_strided_slice %16 {offsets = [10, 0], sizes = [2, 128], strides = [1, 1]} : vector<32x128xf32> to vector<2x128xf32>
    %30 = arith.mulf %29, %10 : vector<2x128xf32>
    %31 = arith.addf %28, %30 : vector<2x128xf32>
    %32 = vector.extract_strided_slice %16 {offsets = [12, 0], sizes = [2, 128], strides = [1, 1]} : vector<32x128xf32> to vector<2x128xf32>
    %33 = arith.mulf %32, %11 : vector<2x128xf32>
    %34 = arith.addf %31, %33 : vector<2x128xf32>
    %35 = vector.extract_strided_slice %16 {offsets = [14, 0], sizes = [2, 128], strides = [1, 1]} : vector<32x128xf32> to vector<2x128xf32>
    %36 = arith.addf %34, %35 : vector<2x128xf32>
    %37 = vector.extract_strided_slice %16 {offsets = [16, 0], sizes = [2, 128], strides = [1, 1]} : vector<32x128xf32> to vector<2x128xf32>
    %38 = arith.mulf %37, %9 : vector<2x128xf32>
    %39 = vector.extract_strided_slice %16 {offsets = [18, 0], sizes = [2, 128], strides = [1, 1]} : vector<32x128xf32> to vector<2x128xf32>
    %40 = arith.mulf %39, %10 : vector<2x128xf32>
    %41 = arith.addf %38, %40 : vector<2x128xf32>
    %42 = vector.extract_strided_slice %16 {offsets = [20, 0], sizes = [2, 128], strides = [1, 1]} : vector<32x128xf32> to vector<2x128xf32>
    %43 = arith.mulf %42, %11 : vector<2x128xf32>
    %44 = arith.addf %41, %43 : vector<2x128xf32>
    %45 = vector.extract_strided_slice %16 {offsets = [22, 0], sizes = [2, 128], strides = [1, 1]} : vector<32x128xf32> to vector<2x128xf32>
    %46 = arith.addf %44, %45 : vector<2x128xf32>
    %47 = tpu.concatenate %26, %36, %46 in 0 : vector<2x128xf32>, vector<2x128xf32>, vector<2x128xf32> -> vector<6x128xf32>
    %c0_15 = arith.constant 0 : index
    %c0_16 = arith.constant 0 : index
    %48 = vector.load %arg6[%c0_15, %c0_16] : memref<128x21xf32, #tpu.memory_space<vmem>>, vector<128x21xf32>
    %cst_17 = arith.constant dense<0.000000e+00> : vector<6x21xf32>
    %49 = tpu.matmul %47, %48, %cst_17 {dimension_numbers = #tpu.dot_dimension_numbers<[1], [0], [0], [1], [0, 0, 1, 1], [], []>} : vector<6x128xf32>, vector<128x21xf32>, vector<6x21xf32> -> vector<6x21xf32>
    %50 = vector.extract_strided_slice %49 {offsets = [0, 20], sizes = [6, 1], strides = [1, 1]} : vector<6x21xf32> to vector<6x1xf32>
    %51 = vector.broadcast %50 : vector<6x1xf32> to vector<6x21xf32>
    %52 = arith.subf %49, %51 : vector<6x21xf32>
    %c0_18 = arith.constant 0 : index
    %c0_19 = arith.constant 0 : index
    %c0_20 = arith.constant 0 : index
    %53 = vector.load %arg7[%c0_18, %c0_19, %c0_20] : memref<1x6x1xf32, #tpu.memory_space<vmem>>, vector<1x6x1xf32>
    %54 = vector.shape_cast %53 : vector<1x6x1xf32> to vector<6x1xf32>
    %55 = vector.broadcast %54 : vector<6x1xf32> to vector<6x21xf32>
    %56 = arith.addf %52, %55 : vector<6x21xf32>
    %cst_21 = arith.constant 1.000000e+03 : f32
    %57 = vector.broadcast %cst_21 : f32 to vector<6x21xf32>
    %58 = arith.mulf %56, %57 : vector<6x21xf32>
    %59 = vector.extract_strided_slice %58 {offsets = [0, 0], sizes = [2, 21], strides = [1, 1]} : vector<6x21xf32> to vector<2x21xf32>
    %60 = vector.extract_strided_slice %58 {offsets = [2, 0], sizes = [2, 21], strides = [1, 1]} : vector<6x21xf32> to vector<2x21xf32>
    %61 = vector.extract_strided_slice %58 {offsets = [4, 0], sizes = [2, 21], strides = [1, 1]} : vector<6x21xf32> to vector<2x21xf32>
    %c0_22 = arith.constant 0 : index
    %c0_23 = arith.constant 0 : index
    %62 = vector.load %arg8[%c0_22, %c0_23] : memref<2x2xf32, #tpu.memory_space<vmem>>, vector<2x1xf32>
    %c0_24 = arith.constant 0 : index
    %c1 = arith.constant 1 : index
    %63 = vector.load %arg8[%c0_24, %c1] : memref<2x2xf32, #tpu.memory_space<vmem>>, vector<2x1xf32>
    %c0_25 = arith.constant 0 : index
    %c0_26 = arith.constant 0 : index
    %64 = vector.load %arg9[%c0_25, %c0_26] : memref<2x2xf32, #tpu.memory_space<vmem>>, vector<2x1xf32>
    %c0_27 = arith.constant 0 : index
    %c1_28 = arith.constant 1 : index
    %65 = vector.load %arg9[%c0_27, %c1_28] : memref<2x2xf32, #tpu.memory_space<vmem>>, vector<2x1xf32>
    %cst_29 = arith.constant 9.99999993E-9 : f32
    %66 = vector.broadcast %cst_29 : f32 to vector<2x21xf32>
    %67 = arith.addf %61, %66 : vector<2x21xf32>
    %cst_30 = arith.constant 1.000000e+00 : f32
    %68 = vector.broadcast %cst_30 : f32 to vector<2x21xf32>
    %69 = arith.divf %68, %67 : vector<2x21xf32>
    %70 = arith.mulf %59, %69 : vector<2x21xf32>
    %71 = vector.broadcast %62 : vector<2x1xf32> to vector<2x21xf32>
    %72 = arith.mulf %70, %71 : vector<2x21xf32>
    %cst_31 = arith.constant 5.000000e-01 : f32
    %73 = vector.broadcast %cst_31 : f32 to vector<2x1xf32>
    %74 = arith.mulf %65, %73 : vector<2x1xf32>
    %75 = vector.broadcast %74 : vector<2x1xf32> to vector<2x21xf32>
    %76 = arith.addf %72, %75 : vector<2x21xf32>
    %77 = arith.mulf %60, %69 : vector<2x21xf32>
    %78 = vector.broadcast %63 : vector<2x1xf32> to vector<2x21xf32>
    %79 = arith.mulf %77, %78 : vector<2x21xf32>
    %cst_32 = arith.constant 5.000000e-01 : f32
    %80 = vector.broadcast %cst_32 : f32 to vector<2x1xf32>
    %81 = arith.mulf %64, %80 : vector<2x1xf32>
    %82 = vector.broadcast %81 : vector<2x1xf32> to vector<2x21xf32>
    %83 = arith.addf %79, %82 : vector<2x21xf32>
    %cst_33 = arith.constant 1.000000e+03 : f32
    %84 = vector.broadcast %cst_33 : f32 to vector<6x21xf32>
    %85 = arith.mulf %52, %84 : vector<6x21xf32>
    %86 = tpu.concatenate %85, %76, %83 in 0 : vector<6x21xf32>, vector<2x21xf32>, vector<2x21xf32> -> vector<10x21xf32>
    %c0_34 = arith.constant 0 : index
    %c0_35 = arith.constant 0 : index
    %c0_36 = arith.constant 0 : index
    %87 = vector.load %arg11[%c0_34, %c0_35, %c0_36] : memref<1x10x21xf32, #tpu.memory_space<vmem>>, vector<1x10x21xf32>
    %88 = vector.shape_cast %87 : vector<1x10x21xf32> to vector<10x21xf32>
    %89 = vector.shape_cast %86 : vector<10x21xf32> to vector<1x10x21xf32>
    tpu.vector_store %arg11[%c0_34, %c0_35, %c0_36], %89 {strides = array<i32>} : memref<1x10x21xf32, #tpu.memory_space<vmem>>, vector<1x10x21xf32>,
    %90 = vector.broadcast %50 : vector<6x1xf32> to vector<6x128xf32>
    %91 = arith.subf %47, %90 : vector<6x128xf32>
    %92 = vector.broadcast %54 : vector<6x1xf32> to vector<6x128xf32>
    %93 = arith.addf %91, %92 : vector<6x128xf32>
    %cst_37 = arith.constant 1.000000e+03 : f32
    %94 = vector.broadcast %cst_37 : f32 to vector<6x128xf32>
    %95 = arith.mulf %93, %94 : vector<6x128xf32>
    %c0_38 = arith.constant 0 : index
    %c0_39 = arith.constant 0 : index
    %c0_40 = arith.constant 0 : index
    %96 = vector.load %arg10[%c0_38, %c0_39, %c0_40] : memref<1x6x128xf32, #tpu.memory_space<vmem>>, vector<1x6x128xf32>
    %97 = vector.shape_cast %96 : vector<1x6x128xf32> to vector<6x128xf32>
    %98 = vector.shape_cast %95 : vector<6x128xf32> to vector<1x6x128xf32>
    tpu.vector_store %arg10[%c0_38, %c0_39, %c0_40], %98 {strides = array<i32>} : memref<1x6x128xf32, #tpu.memory_space<vmem>>, vector<1x6x128xf32>,
    return
  }
  func.func @transform_0(%arg0: i32) -> (i32, i32, i32) {
    %c0_i32 = arith.constant 0 : i32
    %c0_i32_0 = arith.constant 0 : i32
    %c0_i32_1 = arith.constant 0 : i32
    return %arg0, %c0_i32, %c0_i32_0 : i32, i32, i32
  }
  func.func @transform_1(%arg0: i32) -> (i32, i32, i32) {
    %c0_i32 = arith.constant 0 : i32
    %c0_i32_0 = arith.constant 0 : i32
    %c0_i32_1 = arith.constant 0 : i32
    return %arg0, %c0_i32, %c0_i32_0 : i32, i32, i32
  }
  func.func @transform_2(%arg0: i32) -> (i32, i32, i32) {
    %c0_i32 = arith.constant 0 : i32
    %c0_i32_0 = arith.constant 0 : i32
    %c0_i32_1 = arith.constant 0 : i32
    return %arg0, %c0_i32, %c0_i32_0 : i32, i32, i32
  }
  func.func @transform_3(%arg0: i32) -> (i32, i32, i32) {
    %c0_i32 = arith.constant 0 : i32
    %c0_i32_0 = arith.constant 0 : i32
    %c0_i32_1 = arith.constant 0 : i32
    return %arg0, %c0_i32, %c0_i32_0 : i32, i32, i32
  }
  func.func @transform_4(%arg0: i32) -> (i32, i32, i32) {
    %c0_i32 = arith.constant 0 : i32
    %c0_i32_0 = arith.constant 0 : i32
    %c0_i32_1 = arith.constant 0 : i32
    return %arg0, %c0_i32, %c0_i32_0 : i32, i32, i32
  }
  func.func @transform_5(%arg0: i32) -> (i32, i32) {
    %c0_i32 = arith.constant 0 : i32
    %c0_i32_0 = arith.constant 0 : i32
    %c0_i32_1 = arith.constant 0 : i32
    return %c0_i32, %c0_i32_0 : i32, i32
  }
  func.func @transform_6(%arg0: i32) -> (i32, i32, i32) {
    %c0_i32 = arith.constant 0 : i32
    %c0_i32_0 = arith.constant 0 : i32
    %c0_i32_1 = arith.constant 0 : i32
    return %arg0, %c0_i32, %c0_i32_0 : i32, i32, i32
  }
  func.func @transform_7(%arg0: i32) -> (i32, i32) {
    %c0_i32 = arith.constant 0 : i32
    %c0_i32_0 = arith.constant 0 : i32
    %c0_i32_1 = arith.constant 0 : i32
    return %c0_i32, %c0_i32_0 : i32, i32
  }
  func.func @transform_8(%arg0: i32) -> (i32, i32) {
    %c0_i32 = arith.constant 0 : i32
    %c0_i32_0 = arith.constant 0 : i32
    %c0_i32_1 = arith.constant 0 : i32
    return %c0_i32, %c0_i32_0 : i32, i32
  }
  func.func @transform_9(%arg0: i32) -> (i32, i32, i32) {
    %c0_i32 = arith.constant 0 : i32
    %c0_i32_0 = arith.constant 0 : i32
    %c0_i32_1 = arith.constant 0 : i32
    return %arg0, %c0_i32, %c0_i32_0 : i32, i32, i32
  }
  func.func @transform_10(%arg0: i32) -> (i32, i32, i32) {
    %c0_i32 = arith.constant 0 : i32
    %c0_i32_0 = arith.constant 0 : i32
    %c0_i32_1 = arith.constant 0 : i32
    return %arg0, %c0_i32, %c0_i32_0 : i32, i32, i32
  }
}

</mosaic_0001>

<llo_original>
// kernel: squeeze.80
$region0: #{squeeze.80}
  %s0 = inlined_call_operand.vmem [shape: f32[1,6,128], index: 0, kind: input, shape index: {}]
  %s1 = inlined_call_operand.vmem [shape: f32[3,2,128], index: 1, kind: output, shape index: {}]
  $region1: #{squeeze.80} parent=0
    #allocation0 [shape = 'u8[12288]{0}', space=vmem, size = 0x3000, scoped, tag = 'scoped mem for output reshape']
    %v2 = vld [vmem:[%s0] sm:$0x3f]
    %3 = vst [vmem:[#allocation0] sm:$0x3] %v2
    %s4 = scalar_lea.vmem [#allocation0], 6
    %5 = vst [vmem:[%s4] sm:$0xc] %v2
    %s6 = scalar_lea.vmem [#allocation0], 12
    %7 = vst [vmem:[%s6] sm:$0x30] %v2
    %s9 = sshllo.u32 0, 2
    %v11 = vld [vmem:[#allocation0] sm:%s9]
    %s12 = sshllo.u32 0, 2
    %13 = vst [vmem:[%s1] sm:%s12] %v11
    %s14 = scalar_lea.vmem [#allocation0], 8
    %v15 = vld [vmem:[%s14] sm:%s9]
    %s16 = sshllo.u32 0, 2
    %s17 = scalar_lea.vmem %s1, 2
    %18 = vst [vmem:[%s17] sm:%s16] %v15
    %s19 = scalar_lea.vmem [#allocation0], 16
    %v20 = vld [vmem:[%s19] sm:%s9]
    %s21 = sshllo.u32 0, 2
    %s22 = smul.addr 2, 2
    %s23 = scalar_lea.vmem %s1, %s22
    %24 = vst [vmem:[%s23] sm:%s21] %v20

// kernel: squeeze.76
$region0: #{squeeze.76}
  %s0 = inlined_call_operand.vmem [shape: f32[1,6,21], index: 0, kind: input, shape index: {}]
  %s1 = inlined_call_operand.vmem [shape: f32[3,2,21], index: 1, kind: output, shape index: {}]
  $region1: #{squeeze.76} parent=0
    #allocation0 [shape = 'u8[12288]{0}', space=vmem, size = 0x3000, scoped, tag = 'scoped mem for output reshape']
    %v2 = vld [vmem:[%s0] sm:$0x3f]
    %vm3 = vcmask 171008
    %4 = vst.msk [vmem:[#allocation0] sm:$0x3] %vm3, %v2
    %s5 = scalar_lea.vmem [#allocation0], 6
    %6 = vst.msk [vmem:[%s5] sm:$0xc] %vm3, %v2
    %s7 = scalar_lea.vmem [#allocation0], 12
    %8 = vst.msk [vmem:[%s7] sm:$0x30] %vm3, %v2
    %s10 = sshllo.u32 0, 2
    %v12 = vld [vmem:[#allocation0] sm:%s10]
    %s13 = sshllo.u32 0, 2
    %14 = vst [vmem:[%s1] sm:%s13] %v12
    %s15 = scalar_lea.vmem [#allocation0], 8
    %v16 = vld [vmem:[%s15] sm:%s10]
    %s17 = sshllo.u32 0, 2
    %s18 = scalar_lea.vmem %s1, 2
    %19 = vst [vmem:[%s18] sm:%s17] %v16
    %s20 = scalar_lea.vmem [#allocation0], 16
    %v21 = vld [vmem:[%s20] sm:%s10]
    %s22 = sshllo.u32 0, 2
    %s23 = smul.addr 2, 2
    %s24 = scalar_lea.vmem %s1, %s23
    %25 = vst [vmem:[%s24] sm:%s22] %v21

// kernel: mano_param_head_forward.1
$region0: #{mano_param_head_forward.1}
  #allocation0 [shape = 'u32[]', space=smem, size = 0x4, offset = 0x4, fixed_abs, tag = 'smem constant byte address 0x4 - core index']
  #allocation1 [shape = 'u32[144,128]{1,0:T(1,128)}', space=vmem, size = 0x12000, scoped, tag = 'internal scratch']
  %s0 = inlined_call_operand.vmem [shape: f32[2,145,384], index: 0, kind: input, shape index: {}]
  %s1 = inlined_call_operand.vmem [shape: f32[2,1,384], index: 1, kind: input, shape index: {}]
  %s2 = inlined_call_operand.vmem [shape: f32[2,2,145], index: 2, kind: input, shape index: {}]
  %s3 = inlined_call_operand.vmem [shape: f32[2,32,16], index: 3, kind: input, shape index: {}]
  %s4 = inlined_call_operand.vmem [shape: f32[2,16,128], index: 4, kind: input, shape index: {}]
  %s5 = inlined_call_operand.vmem [shape: f32[128,21], index: 5, kind: input, shape index: {}]
  %s6 = inlined_call_operand.vmem [shape: f32[2,6,1], index: 6, kind: input, shape index: {}]
  %s7 = inlined_call_operand.vmem [shape: f32[2,2], index: 7, kind: input, shape index: {}]
  %s8 = inlined_call_operand.vmem [shape: f32[2,2], index: 8, kind: input, shape index: {}]
  %s9 = inlined_call_operand.vmem [shape: f32[2,6,128], index: 9, kind: output, shape index: {0}]
  %s10 = inlined_call_operand.vmem [shape: f32[2,10,21], index: 10, kind: output, shape index: {1}]
  %11 = xla_tuple %s9, %s10
  %s12 = sld [smem:[#allocation0]]
  $region77: #{mano_param_head_forward.1} parent=0
    _
  %s14 = ssub.s32 1, %s12
  %s15 = scalar_select 0, %s14, %s12
  loop: start=0, step=1, limit=4
  $region2: #{mano_param_head_forward.1} parent=0 // loop_pre_header
    _
  $region3: #{mano_param_head_forward.1} parent=0 // loop_header
    %s17 = sphi 0, %s21
    %p18 = scmp.ge.s32.totalorder %s17, 4
    %s27 = sphi 0, %s29
    %s30 = sphi 0, %s27
    %s31 = sphi 0, %s30
    %s47 = sphi 0, %s31
    %s53 = sphi 0, %s55
    %s56 = sphi 0, %s53
    %s57 = sphi 0, %s56
    %s73 = sphi 0, %s57
    %s79 = sphi 0, %s81
    %s82 = sphi 0, %s79
    %s83 = sphi 0, %s82
    %s99 = sphi 0, %s83
    %s105 = sphi 0, %s107
    %s108 = sphi 0, %s105
    %s109 = sphi 0, %s108
    %s125 = sphi 0, %s109
    %s131 = sphi 0, %s133
    %s134 = sphi 0, %s131
    %s135 = sphi 0, %s134
    %s151 = sphi 0, %s135
    %s155 = sphi 0, %s155
    %s157 = sphi 0, %s155
    %s158 = sphi 0, %s157
    %s172 = sphi 0, %s158
    %s178 = sphi 0, %s180
    %s181 = sphi 0, %s178
    %s182 = sphi 0, %s181
    %s198 = sphi 0, %s182
    %s202 = sphi 0, %s202
    %s204 = sphi 0, %s202
    %s205 = sphi 0, %s204
    %s219 = sphi 0, %s205
    %s223 = sphi 0, %s223
    %s225 = sphi 0, %s223
    %s226 = sphi 0, %s225
    %s240 = sphi 0, %s226
    %s246 = sphi 0, %s248
    %s249 = sphi 0, %s246
    %s250 = sphi 0, %s249
    %s266 = sphi 0, %s250
    %s272 = sphi 0, %s274
    %s275 = sphi 0, %s272
    %s276 = sphi 0, %s275
    %s292 = sphi 0, %s276
  $region4: #{mano_param_head_forward.1} parent=0 // loop_header_branch
    %20 = sbr.rel (%p18) target = $region8
  $region5: #{mano_param_head_forward.1} parent=0 // loop_body
    %s22 = ssub.s32 %s17, 1
    %s23 = ssub.s32 %s17, 2
    %s24 = sadd.s32 %s17, 1
    %s25 = ssub.s32 %s17, %s24
    %p26 = scmp.eq.s32.totalorder %s25, 0
    %s28 = sadd.s32 %s27, 1
    %s29 = scalar_select %p26, %s27, %s28
    %p32 = pneg %p26
    %p33 = scmp.eq.s32.totalorder %s17, 1
    %p34 = por %p32, %p33
    %p35 = scmp.ne.s32.totalorder %s27, %s30
    %p36 = scmp.eq.s32.totalorder %s17, 0
    %p37 = por %p35, %p36
    %p38 = scmp.ne.s32.totalorder %s27, %s30
    %p39 = scmp.eq.s32.totalorder %s22, 1
    %p40 = por %p38, %p39
    %p41 = scmp.ne.s32.totalorder %s30, %s31
    %p42 = scmp.eq.s32.totalorder %s22, 0
    %p43 = por %p41, %p42
    %p44 = scmp.ne.s32.totalorder %s30, %s31
    %p45 = scmp.eq.s32.totalorder %s23, 1
    %p46 = por %p44, %p45
    %p48 = scmp.ne.s32.totalorder %s31, %s47
    %p49 = scmp.eq.s32.totalorder %s23, 0
    %p50 = por %p48, %p49
    %s51 = ssub.s32 %s17, %s24
    %p52 = scmp.eq.s32.totalorder %s51, 0
    %s54 = sadd.s32 %s53, 1
    %s55 = scalar_select %p52, %s53, %s54
    %p58 = pneg %p52
    %p59 = scmp.eq.s32.totalorder %s17, 1
    %p60 = por %p58, %p59
    %p61 = scmp.ne.s32.totalorder %s53, %s56
    %p62 = scmp.eq.s32.totalorder %s17, 0
    %p63 = por %p61, %p62
    %p64 = scmp.ne.s32.totalorder %s53, %s56
    %p65 = scmp.eq.s32.totalorder %s22, 1
    %p66 = por %p64, %p65
    %p67 = scmp.ne.s32.totalorder %s56, %s57
    %p68 = scmp.eq.s32.totalorder %s22, 0
    %p69 = por %p67, %p68
    %p70 = scmp.ne.s32.totalorder %s56, %s57
    %p71 = scmp.eq.s32.totalorder %s23, 1
    %p72 = por %p70, %p71
    %p74 = scmp.ne.s32.totalorder %s57, %s73
    %p75 = scmp.eq.s32.totalorder %s23, 0
    %p76 = por %p74, %p75
    %s77 = ssub.s32 %s17, %s24
    %p78 = scmp.eq.s32.totalorder %s77, 0
    %s80 = sadd.s32 %s79, 1
    %s81 = scalar_select %p78, %s79, %s80
    %p84 = pneg %p78
    %p85 = scmp.eq.s32.totalorder %s17, 1
    %p86 = por %p84, %p85
    %p87 = scmp.ne.s32.totalorder %s79, %s82
    %p88 = scmp.eq.s32.totalorder %s17, 0
    %p89 = por %p87, %p88
    %p90 = scmp.ne.s32.totalorder %s79, %s82
    %p91 = scmp.eq.s32.totalorder %s22, 1
    %p92 = por %p90, %p91
    %p93 = scmp.ne.s32.totalorder %s82, %s83
    %p94 = scmp.eq.s32.totalorder %s22, 0
    %p95 = por %p93, %p94
    %p96 = scmp.ne.s32.totalorder %s82, %s83
    %p97 = scmp.eq.s32.totalorder %s23, 1
    %p98 = por %p96, %p97
    %p100 = scmp.ne.s32.totalorder %s83, %s99
    %p101 = scmp.eq.s32.totalorder %s23, 0
    %p102 = por %p100, %p101
    %s103 = ssub.s32 %s17, %s24
    %p104 = scmp.eq.s32.totalorder %s103, 0
    %s106 = sadd.s32 %s105, 1
    %s107 = scalar_select %p104, %s105, %s106
    %p110 = pneg %p104
    %p111 = scmp.eq.s32.totalorder %s17, 1
    %p112 = por %p110, %p111
    %p113 = scmp.ne.s32.totalorder %s105, %s108
    %p114 = scmp.eq.s32.totalorder %s17, 0
    %p115 = por %p113, %p114
    %p116 = scmp.ne.s32.totalorder %s105, %s108
    %p117 = scmp.eq.s32.totalorder %s22, 1
    %p118 = por %p116, %p117
    %p119 = scmp.ne.s32.totalorder %s108, %s109
    %p120 = scmp.eq.s32.totalorder %s22, 0
    %p121 = por %p119, %p120
    %p122 = scmp.ne.s32.totalorder %s108, %s109
    %p123 = scmp.eq.s32.totalorder %s23, 1
    %p124 = por %p122, %p123
    %p126 = scmp.ne.s32.totalorder %s109, %s125
    %p127 = scmp.eq.s32.totalorder %s23, 0
    %p128 = por %p126, %p127
    %s129 = ssub.s32 %s17, %s24
    %p130 = scmp.eq.s32.totalorder %s129, 0
    %s132 = sadd.s32 %s131, 1
    %s133 = scalar_select %p130, %s131, %s132
    %p136 = pneg %p130
    %p137 = scmp.eq.s32.totalorder %s17, 1
    %p138 = por %p136, %p137
    %p139 = scmp.ne.s32.totalorder %s131, %s134
    %p140 = scmp.eq.s32.totalorder %s17, 0
    %p141 = por %p139, %p140
    %p142 = scmp.ne.s32.totalorder %s131, %s134
    %p143 = scmp.eq.s32.totalorder %s22, 1
    %p144 = por %p142, %p143
    %p145 = scmp.ne.s32.totalorder %s134, %s135
    %p146 = scmp.eq.s32.totalorder %s22, 0
    %p147 = por %p145, %p146
    %p148 = scmp.ne.s32.totalorder %s134, %s135
    %p149 = scmp.eq.s32.totalorder %s23, 1
    %p150 = por %p148, %p149
    %p152 = scmp.ne.s32.totalorder %s135, %s151
    %p153 = scmp.eq.s32.totalorder %s23, 0
    %p154 = por %p152, %p153
    %s156 = sadd.s32 %s155, 1
    %p159 = scmp.eq.s32.totalorder %s17, 1
    %p160 = scmp.ne.s32.totalorder %s155, %s157
    %p161 = scmp.eq.s32.totalorder %s17, 0
    %p162 = por %p160, %p161
    %p163 = scmp.ne.s32.totalorder %s155, %s157
    %p164 = scmp.eq.s32.totalorder %s22, 1
    %p165 = por %p163, %p164
    %p166 = scmp.ne.s32.totalorder %s157, %s158
    %p167 = scmp.eq.s32.totalorder %s22, 0
    %p168 = por %p166, %p167
    %p169 = scmp.ne.s32.totalorder %s157, %s158
    %p170 = scmp.eq.s32.totalorder %s23, 1
    %p171 = por %p169, %p170
    %p173 = scmp.ne.s32.totalorder %s158, %s172
    %p174 = scmp.eq.s32.totalorder %s23, 0
    %p175 = por %p173, %p174
    %s176 = ssub.s32 %s17, %s24
    %p177 = scmp.eq.s32.totalorder %s176, 0
    %s179 = sadd.s32 %s178, 1
    %s180 = scalar_select %p177, %s178, %s179
    %p183 = pneg %p177
    %p184 = scmp.eq.s32.totalorder %s17, 1
    %p185 = por %p183, %p184
    %p186 = scmp.ne.s32.totalorder %s178, %s181
    %p187 = scmp.eq.s32.totalorder %s17, 0
    %p188 = por %p186, %p187
    %p189 = scmp.ne.s32.totalorder %s178, %s181
    %p190 = scmp.eq.s32.totalorder %s22, 1
    %p191 = por %p189, %p190
    %p192 = scmp.ne.s32.totalorder %s181, %s182
    %p193 = scmp.eq.s32.totalorder %s22, 0
    %p194 = por %p192, %p193
    %p195 = scmp.ne.s32.totalorder %s181, %s182
    %p196 = scmp.eq.s32.totalorder %s23, 1
    %p197 = por %p195, %p196
    %p199 = scmp.ne.s32.totalorder %s182, %s198
    %p200 = scmp.eq.s32.totalorder %s23, 0
    %p201 = por %p199, %p200
    %s203 = sadd.s32 %s202, 1
    %p206 = scmp.eq.s32.totalorder %s17, 1
    %p207 = scmp.ne.s32.totalorder %s202, %s204
    %p208 = scmp.eq.s32.totalorder %s17, 0
    %p209 = por %p207, %p208
    %p210 = scmp.ne.s32.totalorder %s202, %s204
    %p211 = scmp.eq.s32.totalorder %s22, 1
    %p212 = por %p210, %p211
    %p213 = scmp.ne.s32.totalorder %s204, %s205
    %p214 = scmp.eq.s32.totalorder %s22, 0
    %p215 = por %p213, %p214
    %p216 = scmp.ne.s32.totalorder %s204, %s205
    %p217 = scmp.eq.s32.totalorder %s23, 1
    %p218 = por %p216, %p217
    %p220 = scmp.ne.s32.totalorder %s205, %s219
    %p221 = scmp.eq.s32.totalorder %s23, 0
    %p222 = por %p220, %p221
    %s224 = sadd.s32 %s223, 1
    %p227 = scmp.eq.s32.totalorder %s17, 1
    %p228 = scmp.ne.s32.totalorder %s223, %s225
    %p229 = scmp.eq.s32.totalorder %s17, 0
    %p230 = por %p228, %p229
    %p231 = scmp.ne.s32.totalorder %s223, %s225
    %p232 = scmp.eq.s32.totalorder %s22, 1
    %p233 = por %p231, %p232
    %p234 = scmp.ne.s32.totalorder %s225, %s226
    %p235 = scmp.eq.s32.totalorder %s22, 0
    %p236 = por %p234, %p235
    %p237 = scmp.ne.s32.totalorder %s225, %s226
    %p238 = scmp.eq.s32.totalorder %s23, 1
    %p239 = por %p237, %p238
    %p241 = scmp.ne.s32.totalorder %s226, %s240
    %p242 = scmp.eq.s32.totalorder %s23, 0
    %p243 = por %p241, %p242
    %s244 = ssub.s32 %s17, %s24
    %p245 = scmp.eq.s32.totalorder %s244, 0
    %s247 = sadd.s32 %s246, 1
    %s248 = scalar_select %p245, %s246, %s247
    %p251 = pneg %p245
    %p252 = scmp.eq.s32.totalorder %s17, 1
    %p253 = por %p251, %p252
    %p254 = scmp.ne.s32.totalorder %s246, %s249
    %p255 = scmp.eq.s32.totalorder %s17, 0
    %p256 = por %p254, %p255
    %p257 = scmp.ne.s32.totalorder %s246, %s249
    %p258 = scmp.eq.s32.totalorder %s22, 1
    %p259 = por %p257, %p258
    %p260 = scmp.ne.s32.totalorder %s249, %s250
    %p261 = scmp.eq.s32.totalorder %s22, 0
    %p262 = por %p260, %p261
    %p263 = scmp.ne.s32.totalorder %s249, %s250
    %p264 = scmp.eq.s32.totalorder %s23, 1
    %p265 = por %p263, %p264
    %p267 = scmp.ne.s32.totalorder %s250, %s266
    %p268 = scmp.eq.s32.totalorder %s23, 0
    %p269 = por %p267, %p268
    %s270 = ssub.s32 %s17, %s24
    %p271 = scmp.eq.s32.totalorder %s270, 0
    %s273 = sadd.s32 %s272, 1
    %s274 = scalar_select %p271, %s272, %s273
    %p277 = pneg %p271
    %p278 = scmp.eq.s32.totalorder %s17, 1
    %p279 = por %p277, %p278
    %p280 = scmp.ne.s32.totalorder %s272, %s275
    %p281 = scmp.eq.s32.totalorder %s17, 0
    %p282 = por %p280, %p281
    %p283 = scmp.ne.s32.totalorder %s272, %s275
    %p284 = scmp.eq.s32.totalorder %s22, 1
    %p285 = por %p283, %p284
    %p286 = scmp.ne.s32.totalorder %s275, %s276
    %p287 = scmp.eq.s32.totalorder %s22, 0
    %p288 = por %p286, %p287
    %p289 = scmp.ne.s32.totalorder %s275, %s276
    %p290 = scmp.eq.s32.totalorder %s23, 1
    %p291 = por %p289, %p290
    %p293 = scmp.ne.s32.totalorder %s276, %s292
    %p294 = scmp.eq.s32.totalorder %s23, 0
    %p295 = por %p293, %p294
    %p296 = scmp.le.s32.totalorder 1, %s17
    %p297 = scmp.lt.s32.totalorder %s17, 3
    %p298 = pnand %p296, %p297
    %p299 = pneg %p298
    // Predicated region
    $region9: #{mano_param_head_forward.1} parent=5 // pred_check
      _
    $region10: #{mano_param_head_forward.1} parent=5 // pred_check_branch
      %301 = sbr.rel (%p298) target = $region12
    $region11: #{mano_param_head_forward.1} parent=5 // pred_region
      %s302 = ssub.s32 %s17, 1
      // Predicated region
      $region13: #{mano_param_head_forward.1} parent=11 // pred_check
        %p303 = pneg %p168
      $region14: #{mano_param_head_forward.1} parent=11 // pred_check_branch
        %305 = sbr.rel (%p303) target = $region16
      $region15: #{mano_param_head_forward.1} parent=11 // pred_region
        _
      $region16: #{mano_param_head_forward.1} parent=11 // pred_fallthru
        _
      // Predicated region
      $region17: #{mano_param_head_forward.1} parent=11 // pred_check
        %p306 = pneg %p215
      $region18: #{mano_param_head_forward.1} parent=11 // pred_check_branch
        %308 = sbr.rel (%p306) target = $region20
      $region19: #{mano_param_head_forward.1} parent=11 // pred_region
        _
      $region20: #{mano_param_head_forward.1} parent=11 // pred_fallthru
        _
      // Predicated region
      $region21: #{mano_param_head_forward.1} parent=11 // pred_check
        %p309 = pneg %p236
      $region22: #{mano_param_head_forward.1} parent=11 // pred_check_branch
        %311 = sbr.rel (%p309) target = $region24
      $region23: #{mano_param_head_forward.1} parent=11 // pred_region
        _
      $region24: #{mano_param_head_forward.1} parent=11 // pred_fallthru
        _
    $region12: #{mano_param_head_forward.1} parent=5 // pred_fallthru
      _
    %p312 = scmp.lt.s32.totalorder %s17, 2
    // Predicated region
    $region25: #{mano_param_head_forward.1} parent=5 // pred_check
      %p313 = pneg %p312
    $region26: #{mano_param_head_forward.1} parent=5 // pred_check_branch
      %315 = sbr.rel (%p313) target = $region28
    $region27: #{mano_param_head_forward.1} parent=5 // pred_region
      // Predicated region
      $region29: #{mano_param_head_forward.1} parent=27 // pred_check
        %p316 = pneg %p37
      $region30: #{mano_param_head_forward.1} parent=27 // pred_check_branch
        %318 = sbr.rel (%p316) target = $region32
      $region31: #{mano_param_head_forward.1} parent=27 // pred_region
        %p319 = scmp.lt.s32.totalorder %s17, 1
        %s320 = scalar_select %p319, %s17, 1
        %s321 = smul.addr %s320, 57
        %s322 = smul.addr %s321, 8
        %s323 = scalar_lea.vmem %s0, %s322
      $region32: #{mano_param_head_forward.1} parent=27 // pred_fallthru
        _
      // Predicated region
      $region33: #{mano_param_head_forward.1} parent=27 // pred_check
        %p324 = pneg %p63
      $region34: #{mano_param_head_forward.1} parent=27 // pred_check_branch
        %326 = sbr.rel (%p324) target = $region36
      $region35: #{mano_param_head_forward.1} parent=27 // pred_region
        %p327 = scmp.lt.s32.totalorder %s17, 1
        %s328 = scalar_select %p327, %s17, 1
        %s329 = smul.addr %s328, 3
        %s330 = scalar_lea.vmem %s1, %s329
      $region36: #{mano_param_head_forward.1} parent=27 // pred_fallthru
        _
      // Predicated region
      $region37: #{mano_param_head_forward.1} parent=27 // pred_check
        %p331 = pneg %p89
      $region38: #{mano_param_head_forward.1} parent=27 // pred_check_branch
        %333 = sbr.rel (%p331) target = $region40
      $region39: #{mano_param_head_forward.1} parent=27 // pred_region
        %p334 = scmp.lt.s32.totalorder %s17, 1
        %s335 = scalar_select %p334, %s17, 1
        %s336 = smul.addr %s335, 2
        %s337 = smul.addr %s336, 2
        %s338 = scalar_lea.vmem %s2, %s337
      $region40: #{mano_param_head_forward.1} parent=27 // pred_fallthru
        _
      // Predicated region
      $region41: #{mano_param_head_forward.1} parent=27 // pred_check
        %p339 = pneg %p115
      $region42: #{mano_param_head_forward.1} parent=27 // pred_check_branch
        %341 = sbr.rel (%p339) target = $region44
      $region43: #{mano_param_head_forward.1} parent=27 // pred_region
        %p342 = scmp.lt.s32.totalorder %s17, 1
        %s343 = scalar_select %p342, %s17, 1
        %s344 = smul.addr %s343, 4
        %s345 = smul.addr %s344, 8
        %s346 = scalar_lea.vmem %s3, %s345
      $region44: #{mano_param_head_forward.1} parent=27 // pred_fallthru
        _
      // Predicated region
      $region45: #{mano_param_head_forward.1} parent=27 // pred_check
        %p347 = pneg %p141
      $region46: #{mano_param_head_forward.1} parent=27 // pred_check_branch
        %349 = sbr.rel (%p347) target = $region48
      $region47: #{mano_param_head_forward.1} parent=27 // pred_region
        %p350 = scmp.lt.s32.totalorder %s17, 1
        %s351 = scalar_select %p350, %s17, 1
        %s352 = smul.addr %s351, 2
        %s353 = smul.addr %s352, 8
        %s354 = scalar_lea.vmem %s4, %s353
      $region48: #{mano_param_head_forward.1} parent=27 // pred_fallthru
        _
      // Predicated region
      $region49: #{mano_param_head_forward.1} parent=27 // pred_check
        %p355 = pneg %p188
      $region50: #{mano_param_head_forward.1} parent=27 // pred_check_branch
        %357 = sbr.rel (%p355) target = $region52
      $region51: #{mano_param_head_forward.1} parent=27 // pred_region
        %p358 = scmp.lt.s32.totalorder %s17, 1
        %s359 = scalar_select %p358, %s17, 1
        %s360 = smul.addr %s359, 8
        %s361 = scalar_lea.vmem %s6, %s360
      $region52: #{mano_param_head_forward.1} parent=27 // pred_fallthru
        _
    $region28: #{mano_param_head_forward.1} parent=5 // pred_fallthru
      _
    %p362 = scmp.le.s32.totalorder 1, %s17
    %p363 = scmp.lt.s32.totalorder %s17, 3
    %p364 = pnand %p362, %p363
    %p365 = pneg %p364
    // Predicated region
    $region53: #{mano_param_head_forward.1} parent=5 // pred_check
      _
    $region54: #{mano_param_head_forward.1} parent=5 // pred_check_branch
      %367 = sbr.rel (%p364) target = $region56
    $region55: #{mano_param_head_forward.1} parent=5 // pred_region
      %s368 = ssub.s32 %s17, 1
      %p369 = scmp.lt.s32.totalorder %s22, 1
      %s370 = scalar_select %p369, %s22, 1
      %s371 = smul.addr %s370, 57
      %s372 = smul.addr %s371, 8
      %s373 = scalar_lea.vmem %s0, %s372
      %p374 = pneg %p43
      %p375 = pneg %p40
      %p376 = scmp.lt.s32.totalorder %s22, 1
      %s377 = scalar_select %p376, %s22, 1
      %s378 = smul.addr %s377, 3
      %s379 = scalar_lea.vmem %s1, %s378
      %p380 = pneg %p69
      %p381 = pneg %p66
      %p382 = scmp.lt.s32.totalorder %s22, 1
      %s383 = scalar_select %p382, %s22, 1
      %s384 = smul.addr %s383, 2
      %s385 = smul.addr %s384, 2
      %s386 = scalar_lea.vmem %s2, %s385
      %p387 = pneg %p95
      %p388 = pneg %p92
      %p389 = scmp.lt.s32.totalorder %s22, 1
      %s390 = scalar_select %p389, %s22, 1
      %s391 = smul.addr %s390, 4
      %s392 = smul.addr %s391, 8
      %s393 = scalar_lea.vmem %s3, %s392
      %p394 = pneg %p121
      %p395 = pneg %p118
      %p396 = scmp.lt.s32.totalorder %s22, 1
      %s397 = scalar_select %p396, %s22, 1
      %s398 = smul.addr %s397, 2
      %s399 = smul.addr %s398, 8
      %s400 = scalar_lea.vmem %s4, %s399
      %p401 = pneg %p147
      %p402 = pneg %p144
      %p403 = pneg %p168
      %p404 = pneg %p165
      %p405 = scmp.lt.s32.totalorder %s22, 1
      %s406 = scalar_select %p405, %s22, 1
      %s407 = smul.addr %s406, 8
      %s408 = scalar_lea.vmem %s6, %s407
      %p409 = pneg %p194
      %p410 = pneg %p191
      %p411 = pneg %p215
      %p412 = pneg %p212
      %p413 = pneg %p236
      %p414 = pneg %p233
      %p415 = pneg %p262
      %p416 = pneg %p259
      %p417 = scmp.lt.s32.totalorder %s22, 1
      %s418 = scalar_select %p417, %s22, 1
      %s419 = smul.addr %s418, 8
      %s420 = scalar_lea.vmem %s9, %s419
      %p421 = pneg %p288
      %p422 = pneg %p285
      %p423 = scmp.lt.s32.totalorder %s22, 1
      %s424 = scalar_select %p423, %s22, 1
      %s425 = smul.addr %s424, 2
      %s426 = smul.addr %s425, 8
      %s427 = scalar_lea.vmem %s10, %s426
      %p428 = scmp.lt.s32.totalorder %s22, 1
      %s429 = scalar_select %p428, %s22, 1
      %s430 = smul.addr %s429, 57
      %s431 = smul.addr %s430, 8
      %s432 = scalar_lea.vmem %s0, %s431
      %p433 = scmp.lt.s32.totalorder %s22, 1
      %s434 = scalar_select %p433, %s22, 1
      %s435 = smul.addr %s434, 3
      %s436 = scalar_lea.vmem %s1, %s435
      %p437 = scmp.lt.s32.totalorder %s22, 1
      %s438 = scalar_select %p437, %s22, 1
      %s439 = smul.addr %s438, 2
      %s440 = smul.addr %s439, 2
      %s441 = scalar_lea.vmem %s2, %s440
      %p442 = scmp.lt.s32.totalorder %s22, 1
      %s443 = scalar_select %p442, %s22, 1
      %s444 = smul.addr %s443, 4
      %s445 = smul.addr %s444, 8
      %s446 = scalar_lea.vmem %s3, %s445
      %p447 = scmp.lt.s32.totalorder %s22, 1
      %s448 = scalar_select %p447, %s22, 1
      %s449 = smul.addr %s448, 2
      %s450 = smul.addr %s449, 8
      %s451 = scalar_lea.vmem %s4, %s450
      %p452 = scmp.lt.s32.totalorder %s22, 1
      %s453 = scalar_select %p452, %s22, 1
      %s454 = smul.addr %s453, 8
      %s455 = scalar_lea.vmem %s6, %s454
      %p456 = scmp.lt.s32.totalorder %s22, 1
      %s457 = scalar_select %p456, %s22, 1
      %s458 = smul.addr %s457, 8
      %s459 = scalar_lea.vmem %s9, %s458
      %p460 = scmp.lt.s32.totalorder %s22, 1
      %s461 = scalar_select %p460, %s22, 1
      %s462 = smul.addr %s461, 2
      %s463 = smul.addr %s462, 8
      %s464 = scalar_lea.vmem %s10, %s463
      %v465 = vld [vmem:[%s436] sm:$0x7]
      %v466 = vld [vmem:[%s441] sm:$0xf]
      %v467 = vld [vmem:[%s432] sm:$0xff]
      %v468 = vld [vmem:[%s432 + $0x8] sm:$0xff]
      %v469 = vld [vmem:[%s432 + $0x10] sm:$0xff]
      %v470 = vld [vmem:[%s432 + $0x18] sm:$0xff]
      %v471 = vld [vmem:[%s432 + $0x20] sm:$0xff]
      %v472 = vld [vmem:[%s432 + $0x28] sm:$0xff]
      %v473 = vld [vmem:[%s432 + $0x30] sm:$0xff]
      %v474 = vld [vmem:[%s432 + $0x38] sm:$0xff]
      %v475 = vld [vmem:[%s432 + $0x40] sm:$0xff]
      %v476 = vld [vmem:[%s432 + $0x48] sm:$0xff]
      %v477 = vld [vmem:[%s432 + $0x50] sm:$0xff]
      %v478 = vld [vmem:[%s432 + $0x58] sm:$0xff]
      %v479 = vld [vmem:[%s432 + $0x60] sm:$0xff]
      %v480 = vld [vmem:[%s432 + $0x68] sm:$0xff]
      %v481 = vld [vmem:[%s432 + $0x70] sm:$0xff]
      %v482 = vld [vmem:[%s432 + $0x78] sm:$0xff]
      %v483 = vld [vmem:[%s432 + $0x80] sm:$0xff]
      %v484 = vld [vmem:[%s432 + $0x88] sm:$0xff]
      %v485 = vld [vmem:[%s432 + $0x90] sm:$0xff]
      %v486 = vld [vmem:[%s432 + $0x98] sm:$0xff]
      %v487 = vld [vmem:[%s432 + $0xa0] sm:$0xff]
      %v488 = vld [vmem:[%s432 + $0xa8] sm:$0xff]
      %v489 = vld [vmem:[%s432 + $0xb0] sm:$0xff]
      %v490 = vld [vmem:[%s432 + $0xb8] sm:$0xff]
      %v491 = vld [vmem:[%s432 + $0xc0] sm:$0xff]
      %v492 = vld [vmem:[%s432 + $0xc8] sm:$0xff]
      %v493 = vld [vmem:[%s432 + $0xd0] sm:$0xff]
      %v494 = vld [vmem:[%s432 + $0xd8] sm:$0xff]
      %v495 = vld [vmem:[%s432 + $0xe0] sm:$0xff]
      %v496 = vld [vmem:[%s432 + $0xe8] sm:$0xff]
      %v497 = vld [vmem:[%s432 + $0xf0] sm:$0xff]
      %v498 = vld [vmem:[%s432 + $0xf8] sm:$0xff]
      %v499 = vld [vmem:[%s432 + $0x100] sm:$0xff]
      %v500 = vld [vmem:[%s432 + $0x108] sm:$0xff]
      %v501 = vld [vmem:[%s432 + $0x110] sm:$0xff]
      %v502 = vld [vmem:[%s432 + $0x118] sm:$0xff]
      %v503 = vld [vmem:[%s432 + $0x120] sm:$0xff]
      %v504 = vld [vmem:[%s432 + $0x128] sm:$0xff]
      %v505 = vld [vmem:[%s432 + $0x130] sm:$0xff]
      %v506 = vld [vmem:[%s432 + $0x138] sm:$0xff]
      %v507 = vld [vmem:[%s432 + $0x140] sm:$0xff]
      %v508 = vld [vmem:[%s432 + $0x148] sm:$0xff]
      %v509 = vld [vmem:[%s432 + $0x150] sm:$0xff]
      %v510 = vld [vmem:[%s432 + $0x158] sm:$0xff]
      %v511 = vld [vmem:[%s432 + $0x160] sm:$0xff]
      %v512 = vld [vmem:[%s432 + $0x168] sm:$0xff]
      %v513 = vld [vmem:[%s432 + $0x170] sm:$0xff]
      %v514 = vld [vmem:[%s432 + $0x178] sm:$0xff]
      %v515 = vld [vmem:[%s432 + $0x180] sm:$0xff]
      %v516 = vld [vmem:[%s432 + $0x188] sm:$0xff]
      %v517 = vld [vmem:[%s432 + $0x190] sm:$0xff]
      %v518 = vld [vmem:[%s432 + $0x198] sm:$0xff]
      %v519 = vld [vmem:[%s432 + $0x1a0] sm:$0xff]
      %v520 = vld [vmem:[%s432 + $0x1a8] sm:$0xff]
      %v521 = vld [vmem:[%s432 + $0x1b0] sm:$0x1]
      %v522 = vld [vmem:[%s432 + $0x1b8] sm:$0x1]
      %v523 = vld [vmem:[%s432 + $0x1c0] sm:$0x1]
      %v526 = vunpack.c.l.s4 1983009808
      %v527 = vunpack.c.0.s8 %v526
      %v528 = vlaneseq
      %v529 = vshrl.u32 %v528, 7
      %v530 = vsub.s32 %v527, %v529
      %v531 = vrot.slane %v466, %v530
      %v532 = vcombine.high %v531, %v531
      %vm534 = vcmask 138240
      %v535 = vsel %vm534, %v532, 0
      %vm537 = vcmask 1040384
      %v539 = vsel %vm537, %v521, 0
      %v542 = vsel %vm537, %v522, 0
      %v545 = vsel %vm537, %v523, 0
      %547 = vmatprep.subr.mxu0 %v468
      %548 = vmatpush1.msra.mxu0 %v467
      %549 = vmatprep.subr.mxu0 %v471
      %550 = vmatpush1.msra.mxu0 %v470
      %551 = vmatprep.subr.mxu0 %v474
      %552 = vmatpush1.msra.mxu0 %v473
      %553 = vmatprep.subr.mxu0 %v477
      %554 = vmatpush1.msra.mxu0 %v476
      %555 = vmatprep.subr.mxu0 %v480
      %556 = vmatpush1.msra.mxu0 %v479
      %557 = vmatprep.subr.mxu0 %v483
      %558 = vmatpush1.msra.mxu0 %v482
      %559 = vmatprep.subr.mxu0 %v486
      %560 = vmatpush1.msra.mxu0 %v485
      %561 = vmatprep.subr.mxu0 %v489
      %562 = vmatpush1.msra.mxu0 %v488
      %563 = vmatprep.subr.mxu0 %v492
      %564 = vmatpush1.msra.mxu0 %v491
      %565 = vmatprep.subr.mxu0 %v495
      %566 = vmatpush1.msra.mxu0 %v494
      %567 = vmatprep.subr.mxu0 %v498
      %568 = vmatpush1.msra.mxu0 %v497
      %569 = vmatprep.subr.mxu0 %v501
      %570 = vmatpush1.msra.mxu0 %v500
      %571 = vmatprep.subr.mxu0 %v504
      %572 = vmatpush1.msra.mxu0 %v503
      %573 = vmatprep.subr.mxu0 %v507
      %574 = vmatpush1.msra.mxu0 %v506
      %575 = vmatprep.subr.mxu0 %v510
      %576 = vmatpush1.msra.mxu0 %v509
      %577 = vmatprep.subr.mxu0 %v513
      %578 = vmatpush1.msra.mxu0 %v512
      %579 = vmatprep.subr.mxu0 %v516
      %580 = vmatpush1.msra.mxu0 %v515
      %581 = vmatprep.subr.mxu0 %v519
      %582 = vmatpush1.msra.mxu0 %v518
      %583 = vmatprep.subr.mxu0 %v542
      %584 = vmatpush1.msra.mxu0 %v539
      %585 = vmatprep.subr.mxu0 0.0
      %586 = vmatpush1.msra.mxu0 0.0
      %587 = vmatprep.subr.mxu0 0.0
      %588 = vmatpush1.msra.mxu0 0.0
      %589 = vmatprep.subr.mxu0 0.0
      %590 = vmatpush1.msra.mxu0 0.0
      %591 = vmatprep.subr.mxu0 0.0
      %592 = vmatpush1.msra.mxu0 0.0
      %593 = vmatprep.subr.mxu0 0.0
      %594 = vmatpush1.msra.mxu0 0.0
      %595 = vmatprep.subr.mxu0 0.0
      %596 = vmatpush1.msra.mxu0 0.0
      %597 = vmatprep.subr.mxu0 0.0
      %598 = vmatpush1.msra.mxu0 0.0
      %599 = vmatprep.subr.mxu0 0.0
      %600 = vmatpush1.msra.mxu0 0.0
      %601 = vmatprep.subr.mxu0 0.0
      %602 = vmatpush1.msra.mxu0 0.0
      %603 = vmatprep.subr.mxu0 0.0
      %604 = vmatpush1.msra.mxu0 0.0
      %605 = vmatprep.subr.mxu0 0.0
      %606 = vmatpush1.msra.mxu0 0.0
      %607 = vmatprep.subr.mxu0 0.0
      %608 = vmatpush1.msra.mxu0 0.0
      %609 = vmatprep.subr.mxu0 0.0
      %610 = vmatpush1.msra.mxu0 0.0
      %611 = vmatprep.mubr.f32.mxu0 %v535
      %612 = vmatmul.mubr.f32.gmra.mrb[0].mxu0 %v531
      %v613 = vpop.f32.mrb[0].mxu0
      %v614 = vadd.f32 0.0, %v613
      %v615 = vpop.f32.mrb[0].mxu0
      %v616 = vadd.f32 0.0, %v615
      %617 = vdwg.mxu0
      %618 = vmatprep.subr.mxu0 0.0
      %619 = vmatpush1.msra.mxu0 %v469
      %620 = vmatprep.subr.mxu0 0.0
      %621 = vmatpush1.msra.mxu0 %v472
      %622 = vmatprep.subr.mxu0 0.0
      %623 = vmatpush1.msra.mxu0 %v475
      %624 = vmatprep.subr.mxu0 0.0
      %625 = vmatpush1.msra.mxu0 %v478
      %626 = vmatprep.subr.mxu0 0.0
      %627 = vmatpush1.msra.mxu0 %v481
      %628 = vmatprep.subr.mxu0 0.0
      %629 = vmatpush1.msra.mxu0 %v484
      %630 = vmatprep.subr.mxu0 0.0
      %631 = vmatpush1.msra.mxu0 %v487
      %632 = vmatprep.subr.mxu0 0.0
      %633 = vmatpush1.msra.mxu0 %v490
      %634 = vmatprep.subr.mxu0 0.0
      %635 = vmatpush1.msra.mxu0 %v493
      %636 = vmatprep.subr.mxu0 0.0
      %637 = vmatpush1.msra.mxu0 %v496
      %638 = vmatprep.subr.mxu0 0.0
      %639 = vmatpush1.msra.mxu0 %v499
      %640 = vmatprep.subr.mxu0 0.0
      %641 = vmatpush1.msra.mxu0 %v502
      %642 = vmatprep.subr.mxu0 0.0
      %643 = vmatpush1.msra.mxu0 %v505
      %644 = vmatprep.subr.mxu0 0.0
      %645 = vmatpush1.msra.mxu0 %v508
      %646 = vmatprep.subr.mxu0 0.0
      %647 = vmatpush1.msra.mxu0 %v511
      %648 = vmatprep.subr.mxu0 0.0
      %649 = vmatpush1.msra.mxu0 %v514
      %650 = vmatprep.subr.mxu0 0.0
      %651 = vmatpush1.msra.mxu0 %v517
      %652 = vmatprep.subr.mxu0 0.0
      %653 = vmatpush1.msra.mxu0 %v520
      %654 = vmatprep.subr.mxu0 0.0
      %655 = vmatpush1.msra.mxu0 %v545
      %656 = vmatprep.subr.mxu0 0.0
      %657 = vmatpush1.msra.mxu0 0.0
      %658 = vmatprep.subr.mxu0 0.0
      %659 = vmatpush1.msra.mxu0 0.0
      %660 = vmatprep.subr.mxu0 0.0
      %661 = vmatpush1.msra.mxu0 0.0
      %662 = vmatprep.subr.mxu0 0.0
      %663 = vmatpush1.msra.mxu0 0.0
      %664 = vmatprep.subr.mxu0 0.0
      %665 = vmatpush1.msra.mxu0 0.0
      %666 = vmatprep.subr.mxu0 0.0
      %667 = vmatpush1.msra.mxu0 0.0
      %668 = vmatprep.subr.mxu0 0.0
      %669 = vmatpush1.msra.mxu0 0.0
      %670 = vmatprep.subr.mxu0 0.0
      %671 = vmatpush1.msra.mxu0 0.0
      %672 = vmatprep.subr.mxu0 0.0
      %673 = vmatpush1.msra.mxu0 0.0
      %674 = vmatprep.subr.mxu0 0.0
      %675 = vmatpush1.msra.mxu0 0.0
      %676 = vmatprep.subr.mxu0 0.0
      %677 = vmatpush1.msra.mxu0 0.0
      %678 = vmatprep.subr.mxu0 0.0
      %679 = vmatpush1.msra.mxu0 0.0
      %680 = vmatprep.subr.mxu0 0.0
      %681 = vmatpush1.msra.mxu0 0.0
      %682 = vmatprep.mubr.f32.mxu0 %v535
      %683 = vmatmul.mubr.f32.gmra.mrb[0].mxu0 %v531
      %v684 = vpop.f32.mrb[0].mxu0
      %v685 = vadd.f32 0.0, %v684
      %v686 = vpop.f32.mrb[0].mxu0
      %687 = vdwg.mxu0
      %v689 = vlaneseq
      %v690 = vshrl.u32 %v689, 7
      %v691 = vsub.s32 0, %v690
      %v692 = vrot.slane %v465, %v691
      %v693 = vlaneseq
      %v694 = vshrl.u32 %v693, 7
      %v695 = vsub.s32 1, %v694
      %v696 = vrot.slane %v465, %v695
      %v697 = vlaneseq
      %v698 = vshrl.u32 %v697, 7
      %v699 = vsub.s32 2, %v698
      %v700 = vrot.slane %v465, %v699
      %v704 = vadd.f32 %v692, %v614
      %v705 = vadd.f32 %v696, %v616
      %v706 = vadd.f32 %v700, %v685
      %v707 = vld [vmem:[%s446] sm:$0xff]
      %v708 = vld [vmem:[%s446 + $0x8] sm:$0xff]
      %v709 = vld [vmem:[%s446 + $0x10] sm:$0xff]
      %v710 = vld [vmem:[%s446 + $0x18] sm:$0xff]
      %v711 = vld [vmem:[%s451] sm:$0xff]
      %v712 = vld [vmem:[%s451 + $0x8] sm:$0xff]
      %vm713 = vcmask 130048
      %v715 = vsel %vm713, %v707, 0
      %v718 = vsel %vm713, %v708, 0
      %v721 = vsel %vm713, %v709, 0
      %v724 = vsel %vm713, %v710, 0
      %726 = vmatprep.subr.mxu0 0.0
      %727 = vmatpush1.msra.mxu0 %v711
      %728 = vmatprep.subr.mxu0 0.0
      %729 = vmatpush1.msra.mxu0 %v712
      %730 = vmatprep.subr.mxu0 0.0
      %731 = vmatpush1.msra.mxu0 0.0
      %732 = vmatprep.subr.mxu0 0.0
      %733 = vmatpush1.msra.mxu0 0.0
      %734 = vmatprep.subr.mxu0 0.0
      %735 = vmatpush1.msra.mxu0 0.0
      %736 = vmatprep.subr.mxu0 0.0
      %737 = vmatpush1.msra.mxu0 0.0
      %738 = vmatprep.subr.mxu0 0.0
      %739 = vmatpush1.msra.mxu0 0.0
      %740 = vmatprep.subr.mxu0 0.0
      %741 = vmatpush1.msra.mxu0 0.0
      %742 = vmatprep.subr.mxu0 0.0
      %743 = vmatpush1.msra.mxu0 0.0
      %744 = vmatprep.subr.mxu0 0.0
      %745 = vmatpush1.msra.mxu0 0.0
      %746 = vmatprep.subr.mxu0 0.0
      %747 = vmatpush1.msra.mxu0 0.0
      %748 = vmatprep.subr.mxu0 0.0
      %749 = vmatpush1.msra.mxu0 0.0
      %750 = vmatprep.subr.mxu0 0.0
      %751 = vmatpush1.msra.mxu0 0.0
      %752 = vmatprep.subr.mxu0 0.0
      %753 = vmatpush1.msra.mxu0 0.0
      %754 = vmatprep.subr.mxu0 0.0
      %755 = vmatpush1.msra.mxu0 0.0
      %756 = vmatprep.subr.mxu0 0.0
      %757 = vmatpush1.msra.mxu0 0.0
      %758 = vmatprep.subr.mxu0 0.0
      %759 = vmatpush1.msra.mxu0 0.0
      %760 = vmatprep.subr.mxu0 0.0
      %761 = vmatpush1.msra.mxu0 0.0
      %762 = vmatprep.subr.mxu0 0.0
      %763 = vmatpush1.msra.mxu0 0.0
      %764 = vmatprep.subr.mxu0 0.0
      %765 = vmatpush1.msra.mxu0 0.0
      %766 = vmatprep.subr.mxu0 0.0
      %767 = vmatpush1.msra.mxu0 0.0
      %768 = vmatprep.subr.mxu0 0.0
      %769 = vmatpush1.msra.mxu0 0.0
      %770 = vmatprep.subr.mxu0 0.0
      %771 = vmatpush1.msra.mxu0 0.0
      %772 = vmatprep.subr.mxu0 0.0
      %773 = vmatpush1.msra.mxu0 0.0
      %774 = vmatprep.subr.mxu0 0.0
      %775 = vmatpush1.msra.mxu0 0.0
      %776 = vmatprep.subr.mxu0 0.0
      %777 = vmatpush1.msra.mxu0 0.0
      %778 = vmatprep.subr.mxu0 0.0
      %779 = vmatpush1.msra.mxu0 0.0
      %780 = vmatprep.subr.mxu0 0.0
      %781 = vmatpush1.msra.mxu0 0.0
      %782 = vmatprep.subr.mxu0 0.0
      %783 = vmatpush1.msra.mxu0 0.0
      %784 = vmatprep.subr.mxu0 0.0
      %785 = vmatpush1.msra.mxu0 0.0
      %786 = vmatprep.subr.mxu0 0.0
      %787 = vmatpush1.msra.mxu0 0.0
      %788 = vmatprep.subr.mxu0 0.0
      %789 = vmatpush1.msra.mxu0 0.0
      %790 = vmatprep.mubr.f32.mxu0 0.0
      %791 = vmatmul.mubr.f32.gmra.mrb[0].mxu0 %v715
      %v792 = vpop.f32.mrb[0].mxu0
      %v793 = vadd.f32 0.0, %v792
      %v794 = vpop.f32.mrb[0].mxu0
      %795 = vmatprep.mubr.f32.mxu0 0.0
      %796 = vmatmul.mubr.f32.gmra.mrb[0].mxu0 %v718
      %v797 = vpop.f32.mrb[0].mxu0
      %v798 = vadd.f32 0.0, %v797
      %v799 = vpop.f32.mrb[0].mxu0
      %800 = vmatprep.mubr.f32.mxu0 0.0
      %801 = vmatmul.mubr.f32.gmra.mrb[0].mxu0 %v721
      %v802 = vpop.f32.mrb[0].mxu0
      %v803 = vadd.f32 0.0, %v802
      %v804 = vpop.f32.mrb[0].mxu0
      %805 = vmatprep.mubr.f32.mxu0 0.0
      %806 = vmatmul.mubr.f32.gmra.mrb[0].mxu0 %v724
      %v807 = vpop.f32.mrb[0].mxu0
      %v808 = vpop.f32.mrb[0].mxu0
      %809 = vdwg.mxu0
      %v810 = vmul.f32 %v793, %v704
      %v812 = vrot.slane %v705, 6
      %v814 = vmul.f32 %v793, %v812
      %v816 = vrot.slane %v814, 2
      %v818 = vadd.f32 %v810, %v816
      %v820 = vrot.slane %v706, 4
      %v822 = vmul.f32 %v793, %v820
      %v824 = vrot.slane %v822, 4
      %v826 = vadd.f32 %v818, %v824
      %v828 = vrot.slane %v793, 6
      %v830 = vadd.f32 %v826, %v828
      %v831 = vmul.f32 %v798, %v704
      %v832 = vmul.f32 %v798, %v812
      %v834 = vrot.slane %v832, 2
      %v836 = vadd.f32 %v831, %v834
      %v837 = vmul.f32 %v798, %v820
      %v839 = vrot.slane %v837, 4
      %v841 = vadd.f32 %v836, %v839
      %v843 = vrot.slane %v798, 6
      %v845 = vadd.f32 %v841, %v843
      %v846 = vmul.f32 %v803, %v704
      %v847 = vmul.f32 %v803, %v812
      %v849 = vrot.slane %v847, 2
      %v851 = vadd.f32 %v846, %v849
      %v852 = vmul.f32 %v803, %v820
      %v854 = vrot.slane %v852, 4
      %v856 = vadd.f32 %v851, %v854
      %v858 = vrot.slane %v803, 6
      %v860 = vadd.f32 %v856, %v858
      %v862 = vrot.slane %v845, 6
      %v865 = vrot.slane %v860, 4
      %vm867 = vcmask 1041408
      %v868 = vsel %vm867, %v830, %v862
      %vm869 = vcmask 1043456
      %v870 = vsel %vm869, %v868, %v865
      %v871 = vld [vmem:[%s5] sm:$0xff]
      %v872 = vld [vmem:[%s5 + $0x8] sm:$0xff]
      %v873 = vld [vmem:[%s5 + $0x10] sm:$0xff]
      %v874 = vld [vmem:[%s5 + $0x18] sm:$0xff]
      %v875 = vld [vmem:[%s5 + $0x20] sm:$0xff]
      %v876 = vld [vmem:[%s5 + $0x28] sm:$0xff]
      %v877 = vld [vmem:[%s5 + $0x30] sm:$0xff]
      %v878 = vld [vmem:[%s5 + $0x38] sm:$0xff]
      %v879 = vld [vmem:[%s5 + $0x40] sm:$0xff]
      %v880 = vld [vmem:[%s5 + $0x48] sm:$0xff]
      %v881 = vld [vmem:[%s5 + $0x50] sm:$0xff]
      %v882 = vld [vmem:[%s5 + $0x58] sm:$0xff]
      %v883 = vld [vmem:[%s5 + $0x60] sm:$0xff]
      %v884 = vld [vmem:[%s5 + $0x68] sm:$0xff]
      %v885 = vld [vmem:[%s5 + $0x70] sm:$0xff]
      %v886 = vld [vmem:[%s5 + $0x78] sm:$0xff]
      %887 = vmatprep.subr.mxu0 0.0
      %888 = vmatpush1.msra.mxu0 %v871
      %889 = vmatprep.subr.mxu0 0.0
      %890 = vmatpush1.msra.mxu0 %v872
      %891 = vmatprep.subr.mxu0 0.0
      %892 = vmatpush1.msra.mxu0 %v873
      %893 = vmatprep.subr.mxu0 0.0
      %894 = vmatpush1.msra.mxu0 %v874
      %895 = vmatprep.subr.mxu0 0.0
      %896 = vmatpush1.msra.mxu0 %v875
      %897 = vmatprep.subr.mxu0 0.0
      %898 = vmatpush1.msra.mxu0 %v876
      %899 = vmatprep.subr.mxu0 0.0
      %900 = vmatpush1.msra.mxu0 %v877
      %901 = vmatprep.subr.mxu0 0.0
      %902 = vmatpush1.msra.mxu0 %v878
      %903 = vmatprep.subr.mxu0 0.0
      %904 = vmatpush1.msra.mxu0 %v879
      %905 = vmatprep.subr.mxu0 0.0
      %906 = vmatpush1.msra.mxu0 %v880
      %907 = vmatprep.subr.mxu0 0.0
      %908 = vmatpush1.msra.mxu0 %v881
      %909 = vmatprep.subr.mxu0 0.0
      %910 = vmatpush1.msra.mxu0 %v882
      %911 = vmatprep.subr.mxu0 0.0
      %912 = vmatpush1.msra.mxu0 %v883
      %913 = vmatprep.subr.mxu0 0.0
      %914 = vmatpush1.msra.mxu0 %v884
      %915 = vmatprep.subr.mxu0 0.0
      %916 = vmatpush1.msra.mxu0 %v885
      %917 = vmatprep.subr.mxu0 0.0
      %918 = vmatpush1.msra.mxu0 %v886
      %919 = vmatprep.subr.mxu0 0.0
      %920 = vmatpush1.msra.mxu0 0.0
      %921 = vmatprep.subr.mxu0 0.0
      %922 = vmatpush1.msra.mxu0 0.0
      %923 = vmatprep.subr.mxu0 0.0
      %924 = vmatpush1.msra.mxu0 0.0
      %925 = vmatprep.subr.mxu0 0.0
      %926 = vmatpush1.msra.mxu0 0.0
      %927 = vmatprep.subr.mxu0 0.0
      %928 = vmatpush1.msra.mxu0 0.0
      %929 = vmatprep.subr.mxu0 0.0
      %930 = vmatpush1.msra.mxu0 0.0
      %931 = vmatprep.subr.mxu0 0.0
      %932 = vmatpush1.msra.mxu0 0.0
      %933 = vmatprep.subr.mxu0 0.0
      %934 = vmatpush1.msra.mxu0 0.0
      %935 = vmatprep.subr.mxu0 0.0
      %936 = vmatpush1.msra.mxu0 0.0
      %937 = vmatprep.subr.mxu0 0.0
      %938 = vmatpush1.msra.mxu0 0.0
      %939 = vmatprep.subr.mxu0 0.0
      %940 = vmatpush1.msra.mxu0 0.0
      %941 = vmatprep.subr.mxu0 0.0
      %942 = vmatpush1.msra.mxu0 0.0
      %943 = vmatprep.subr.mxu0 0.0
      %944 = vmatpush1.msra.mxu0 0.0
      %945 = vmatprep.subr.mxu0 0.0
      %946 = vmatpush1.msra.mxu0 0.0
      %947 = vmatprep.subr.mxu0 0.0
      %948 = vmatpush1.msra.mxu0 0.0
      %949 = vmatprep.subr.mxu0 0.0
      %950 = vmatpush1.msra.mxu0 0.0
      %951 = vmatprep.mubr.f32.mxu0 0.0
      %952 = vmatmul.mubr.f32.gmra.mrb[0].mxu0 %v870
      %v953 = vpop.f32.mrb[0].mxu0
      %v954 = vadd.f32 0.0, %v953
      %v955 = vpop.f32.mrb[0].mxu0
      %956 = vdwg.mxu0
      %958 = vset.pattern.permute.xlu0 20
      %959 = vperm.xlu0 %958, %v954
      %v960 = vpop.permute.xlu0 %959
      %v962 = vsub.f32 %v954, %v960
      %v963 = vld [vmem:[%s455] sm:$0x3f]
      %965 = vset.pattern.permute.xlu0 0
      %966 = vperm.xlu0 %965, %v963
      %v967 = vpop.permute.xlu0 %966
      %v969 = vadd.f32 %v962, %v967
      %v970 = vmul.f32 %v969, 1000.0
      %v971 = vld [vmem:[%s7] sm:$0x3]
      %v972 = vld [vmem:[%s8] sm:$0x3]
      %v973 = vadd.f32 %v970, 1e-08
      %v974 = vrcp.pop %v973
      %v975 = vmul.f32 1.0, %v974
      %v977 = vrot.slane %v975, 4
      %v979 = vmul.f32 %v970, %v977
      %981 = vset.pattern.permute.xlu0 0
      %982 = vperm.xlu0 %981, %v971
      %v983 = vpop.permute.xlu0 %982
      %v985 = vmul.f32 %v979, %v983
      %v986 = vmul.f32 %v972, 0.5
      %988 = vset.pattern.permute.xlu0 1
      %989 = vperm.xlu0 %988, %v986
      %v990 = vpop.permute.xlu0 %989
      %v992 = vadd.f32 %v985, %v990
      %v993 = vrot.slane %v975, 2
      %v995 = vmul.f32 %v970, %v993
      %996 = vset.pattern.permute.xlu0 1
      %997 = vperm.xlu0 %996, %v971
      %v998 = vpop.permute.xlu0 %997
      %v999 = vrot.slane %v998, 6
      %v1001 = vmul.f32 %v995, %v999
      %1002 = vset.pattern.permute.xlu0 0
      %1003 = vperm.xlu0 %1002, %v986
      %v1004 = vpop.permute.xlu0 %1003
      %v1005 = vrot.slane %v1004, 6
      %v1007 = vadd.f32 %v1001, %v1005
      %v1008 = vmul.f32 %v962, 1000.0
      %v1010 = vrot.slane %v992, 2
      %v1013 = vrot.slane %v1007, 2
      %vm1015 = vcmask 1045504
      %v1016 = vsel %vm1015, %v1008, %v1010
      %vm1017 = vcmask 171008
      %1018 = vst.msk [vmem:[%s464] sm:$0xff] %vm1017, %v1016
      %vm1019 = vcmask 164864
      %1020 = vst.msk [vmem:[%s464 + $0x8] sm:$0x3] %vm1019, %v1013
      %v1021 = vsub.f32 %v870, %v960
      %v1022 = vadd.f32 %v1021, %v967
      %v1023 = vmul.f32 %v1022, 1000.0
      %1024 = vst [vmem:[%s459] sm:$0x3f] %v1023
      %p1025 = scmp.lt.s32.totalorder %s22, 1
      %s1026 = scalar_select %p1025, %s22, 1
      %s1027 = smul.addr %s1026, 8
      %s1028 = scalar_lea.vmem %s9, %s1027
      %p1029 = scmp.lt.s32.totalorder %s22, 1
      %s1030 = scalar_select %p1029, %s22, 1
      %s1031 = smul.addr %s1030, 2
      %s1032 = smul.addr %s1031, 8
      %s1033 = scalar_lea.vmem %s10, %s1032
      // Predicated region
      $region57: #{mano_param_head_forward.1} parent=55 // pred_check
        %p1034 = pneg %p259
      $region58: #{mano_param_head_forward.1} parent=55 // pred_check_branch
        %1036 = sbr.rel (%p1034) target = $region60
      $region59: #{mano_param_head_forward.1} parent=55 // pred_region
        _
      $region60: #{mano_param_head_forward.1} parent=55 // pred_fallthru
        _
      // Predicated region
      $region61: #{mano_param_head_forward.1} parent=55 // pred_check
        %p1037 = pneg %p285
      $region62: #{mano_param_head_forward.1} parent=55 // pred_check_branch
        %1039 = sbr.rel (%p1037) target = $region64
      $region63: #{mano_param_head_forward.1} parent=55 // pred_region
        _
      $region64: #{mano_param_head_forward.1} parent=55 // pred_fallthru
        _
    $region56: #{mano_param_head_forward.1} parent=5 // pred_fallthru
      _
    %p1040 = scmp.le.s32.totalorder 2, %s17
    // Predicated region
    $region65: #{mano_param_head_forward.1} parent=5 // pred_check
      %p1041 = pneg %p1040
    $region66: #{mano_param_head_forward.1} parent=5 // pred_check_branch
      %1043 = sbr.rel (%p1041) target = $region68
    $region67: #{mano_param_head_forward.1} parent=5 // pred_region
      %s1044 = ssub.s32 %s17, 2
      // Predicated region
      $region69: #{mano_param_head_forward.1} parent=67 // pred_check
        %p1045 = pneg %p265
      $region70: #{mano_param_head_forward.1} parent=67 // pred_check_branch
        %1047 = sbr.rel (%p1045) target = $region72
      $region71: #{mano_param_head_forward.1} parent=67 // pred_region
        %p1048 = scmp.lt.s32.totalorder %s23, 1
        %s1049 = scalar_select %p1048, %s23, 1
        %s1050 = smul.addr %s1049, 8
        %s1051 = scalar_lea.vmem %s9, %s1050
      $region72: #{mano_param_head_forward.1} parent=67 // pred_fallthru
        _
      // Predicated region
      $region73: #{mano_param_head_forward.1} parent=67 // pred_check
        %p1052 = pneg %p291
      $region74: #{mano_param_head_forward.1} parent=67 // pred_check_branch
        %1054 = sbr.rel (%p1052) target = $region76
      $region75: #{mano_param_head_forward.1} parent=67 // pred_region
        %p1055 = scmp.lt.s32.totalorder %s23, 1
        %s1056 = scalar_select %p1055, %s23, 1
        %s1057 = smul.addr %s1056, 2
        %s1058 = smul.addr %s1057, 8
        %s1059 = scalar_lea.vmem %s10, %s1058
      $region76: #{mano_param_head_forward.1} parent=67 // pred_fallthru
        _
    $region68: #{mano_param_head_forward.1} parent=5 // pred_fallthru
      _
  $region6: #{mano_param_head_forward.1} parent=0 // loop_footer
    %s21 = sadd.s32 1, %s17
  $region7: #{mano_param_head_forward.1} parent=0 // loop_footer_branch
    %16 = sbr.rel target = $region3
  $region8: #{mano_param_head_forward.1} parent=0 // loop_exit
    _

</llo_original>
